<compile_context>
chip_gen: v6e
topology: v6e:2x2x1
jax: 0.10.0
libtpu: 0.0.40
codegen_flags: <defaults>
</compile_context>

<pallas_src>
import functools

import jax
import jax.numpy as jnp
import numpy as np
from jax.experimental import pallas as pl
from jax.experimental.pallas import tpu as pltpu

EPS = 1e-5


# --------------------------------------------------------------------------
# fused Pallas kernel
# --------------------------------------------------------------------------
def _residual_block_kernel(x_ref, w1t_ref, w2t_ref, g1_ref, be1_ref,
                           g2_ref, be2_ref, mask_ref, alpha_ref,
                           o_ref, pad_sc, *, N, C, H, W):
    """conv1 + BN1 + PReLU + conv2 + BN2 + residual, all in VMEM.

    Layout: rows = N*C (flattened NCHW leading dims), lanes = spatial.
    Working spatial layout is "q layout" of length Lout = H*(W+2) with
    q = h*(W+2) + w; columns with w >= W are junk (row wrap-around) and are
    masked out of the BN statistics and never stored.
    """
    Wp = W + 2                       # padded row length
    Lout = H * Wp                    # q-layout length (incl. 2 junk cols/row)
    inv_n = 1.0 / float(N * H * W)   # BN normalizer (valid pixels per channel)

    xf = x_ref[...]                  # (N*C, H*W) -- single HBM->VMEM trip
    mask = mask_ref[...]             # (1, Lout): 1.0 where w < W
    alpha = alpha_ref[0]             # shared PReLU slope (SMEM scalar)

    # ---- zero-pad x inside VMEM (no XLA pad, no extra HBM copy) ----------
    pad_sc[...] = jnp.zeros_like(pad_sc)
    for h in range(H):
        pad_sc[:, (h + 1) * Wp + 1:(h + 1) * Wp + 1 + W] = \
            xf[:, h * W:(h + 1) * W]
    xp = pad_sc[...]                 # (N*C, Lpad)

    def conv3x3(src, wt_ref):
        """im2col conv: one K=9*C MXU matmul per image."""
        w_t = wt_ref[...]                                      # (Cout, 9*Cin)
        outs = []
        for n in range(N):
            rows = src[n * C:(n + 1) * C, :]                   # (C, Lpad)
            taps = [rows[:, dy * Wp + dx:dy * Wp + dx + Lout]  # (C, Lout)
                    for dy in range(3) for dx in range(3)]
            patch = jnp.concatenate(taps, axis=0)              # (9*C, Lout)
            outs.append(jnp.dot(w_t, patch,
                                preferred_element_type=jnp.float32))
        return jnp.concatenate(outs, axis=0)                   # (N*C, Lout)

    def batchnorm(y, g_ref, be_ref):
        """Training-mode BN: one-pass masked stats + fused per-channel affine."""
        ym = y * mask
        s_rows = jnp.sum(ym, axis=1, keepdims=True)            # (N*C, 1)
        ss_rows = jnp.sum(ym * ym, axis=1, keepdims=True)
        s_c, ss_c = s_rows[0:C, :], ss_rows[0:C, :]
        for n in range(1, N):
            s_c = s_c + s_rows[n * C:(n + 1) * C, :]
            ss_c = ss_c + ss_rows[n * C:(n + 1) * C, :]
        mean = s_c * inv_n                                     # (C, 1)
        var = ss_c * inv_n - mean * mean
        scale = g_ref[...] * jax.lax.rsqrt(var + EPS)          # (C, 1)
        shift = be_ref[...] - mean * scale
        scale_r = jnp.concatenate([scale] * N, axis=0)         # (N*C, 1)
        shift_r = jnp.concatenate([shift] * N, axis=0)
        return y * scale_r + shift_r

    # ---- conv1 -> BN1 -> PReLU -------------------------------------------
    # (conv bias omitted: training-mode BN subtracts the per-channel mean
    #  immediately after, so a per-channel bias cancels exactly.)
    y = conv3x3(xp, w1t_ref)
    y = batchnorm(y, g1_ref, be1_ref)
    y = jnp.where(y >= 0.0, y, alpha * y)

    # ---- re-pad y1 into the SAME VMEM scratch (y1 never touches HBM) -----
    pad_sc[...] = jnp.zeros_like(pad_sc)
    pad_sc[:, Wp + 1:Wp + 1 + Lout] = y * mask
    y1p = pad_sc[...]

    # ---- conv2 -> BN2 -> residual add; lane-dense (H*W wide) output ------
    y2 = conv3x3(y1p, w2t_ref)
    y2 = batchnorm(y2, g2_ref, be2_ref)
    for h in range(H):
        o_ref[:, h * W:(h + 1) * W] = (y2[:, h * Wp:h * Wp + W]
                                       + xf[:, h * W:(h + 1) * W])


# --------------------------------------------------------------------------
# wrapper: NCHW in / NCHW out, single pallas_call, no transposes/pads in XLA
# --------------------------------------------------------------------------
def residual_block(x_nchw, params):
    """x_nchw: (N, C, H, W) float32. Returns (N, C, H, W) float32."""
    (w1, b1, g1, be1, alpha, w2, b2, g2, be2) = params
    del b1, b2                         # cancelled by training-mode BN
    N, C, H, W = x_nchw.shape
    Wp = W + 2
    Lout = H * Wp
    Lpad = Lout + 2 * Wp + 2           # (H+2)*(W+2) + 2 slack lanes for taps

    xf = x_nchw.astype(jnp.float32).reshape(N * C, H * W)      # free NCHW view
    w1t = w1.reshape(9 * C, C).T.astype(jnp.float32)           # (Cout, 9*Cin)
    w2t = w2.reshape(9 * C, C).T.astype(jnp.float32)
    g1c, be1c = g1.reshape(C, 1), be1.reshape(C, 1)
    g2c, be2c = g2.reshape(C, 1), be2.reshape(C, 1)
    col = jnp.arange(Lout, dtype=jnp.int32) % Wp
    mask = (col < W).astype(jnp.float32).reshape(1, Lout)      # valid-column mask
    alpha_s = alpha.reshape(1).astype(jnp.float32)

    kernel = functools.partial(_residual_block_kernel, N=N, C=C, H=H, W=W)
    vmem = pl.BlockSpec(memory_space=pltpu.MemorySpace.VMEM)
    smem = pl.BlockSpec(memory_space=pltpu.MemorySpace.SMEM)

    out = pl.pallas_call(
        kernel,
        out_shape=jax.ShapeDtypeStruct((N * C, H * W), jnp.float32),
        in_specs=[vmem] * 8 + [smem],
        out_specs=vmem,
        scratch_shapes=[pltpu.VMEM((N * C, Lpad), jnp.float32)],
        compiler_params=pltpu.CompilerParams(
            vmem_limit_bytes=32 * 1024 * 1024),
    )(xf, w1t, w2t, g1c, be1c, g2c, be2c, mask, alpha_s)

    return out.reshape(N, C, H, W)                             # free view back


# --------------------------------------------------------------------------
# pure-JAX reference for verification (keeps the conv biases)
# --------------------------------------------------------------------------
def reference_block(x_nchw, params):
    (w1, b1, g1, be1, alpha, w2, b2, g2, be2) = params
    x = jnp.transpose(x_nchw, (0, 2, 3, 1)).astype(jnp.float32)

    def conv(z, w, b):
        y = jax.lax.conv_general_dilated(
            z, w, (1, 1), "SAME",
            dimension_numbers=("NHWC", "HWIO", "NHWC"))
        return y + b.reshape(1, 1, 1, -1)

    def bn(y, g, be):
        m = jnp.mean(y, axis=(0, 1, 2), keepdims=True)
        v = jnp.mean((y - m) ** 2, axis=(0, 1, 2), keepdims=True)
        return g.reshape(1, 1, 1, -1) * (y - m) / jnp.sqrt(v + EPS) \
            + be.reshape(1, 1, 1, -1)

    y = bn(conv(x, w1, b1), g1, be1)
    y = jnp.where(y >= 0.0, y, alpha.reshape(()) * y)
    y = bn(conv(y, w2, b2), g2, be2)
    out = y + x
    return jnp.transpose(out, (0, 3, 1, 2))


# --------------------------------------------------------------------------
def make_params(key, n_channels, kernel_size=3):
    assert kernel_size == 3
    ks = jax.random.split(key, 8)
    C = n_channels
    w1 = 0.1 * jax.random.normal(ks[0], (3, 3, C, C), jnp.float32)   # HWIO
    b1 = 0.1 * jax.random.normal(ks[1], (1, C), jnp.float32)
    g1 = 1.0 + 0.1 * jax.random.normal(ks[2], (1, C), jnp.float32)   # BN gamma
    be1 = 0.1 * jax.random.normal(ks[3], (1, C), jnp.float32)        # BN beta
    alpha = jnp.full((1, 1), 0.25, jnp.float32)                      # PReLU
    w2 = 0.1 * jax.random.normal(ks[4], (3, 3, C, C), jnp.float32)
    b2 = 0.1 * jax.random.normal(ks[5], (1, C), jnp.float32)
    g2 = 1.0 + 0.1 * jax.random.normal(ks[6], (1, C), jnp.float32)
    be2 = 0.1 * jax.random.normal(ks[7], (1, C), jnp.float32)
    return (w1, b1, g1, be1, alpha, w2, b2, g2, be2)


if __name__ == "__main__":
    key = jax.random.PRNGKey(0)
    kx, kp = jax.random.split(key)

    N, C, H, W = 2, 8, 16, 16            # args.n_channels=8, small_kernel_size=3
    x = jax.random.normal(kx, (N, C, H, W), jnp.float32)
    params = make_params(kp, C)

    out = jax.jit(residual_block)(x, params)
    out = jax.block_until_ready(out)

    ref = jax.block_until_ready(reference_block(x, params))
    np.testing.assert_allclose(np.asarray(out), np.asarray(ref),
                               rtol=2e-4, atol=2e-4)

    assert out.shape == (N, C, H, W) and out.dtype == jnp.float32
    print("KERNEL_OK")
</pallas_src>

<mosaic_0001>
module attributes {stable_mosaic.version = 11 : i64} {
  func.func @_residual_block_kernel(%arg0: memref<16x256xf32, #tpu.memory_space<vmem>>, %arg1: memref<8x72xf32, #tpu.memory_space<vmem>>, %arg2: memref<8x72xf32, #tpu.memory_space<vmem>>, %arg3: memref<8x1xf32, #tpu.memory_space<vmem>>, %arg4: memref<8x1xf32, #tpu.memory_space<vmem>>, %arg5: memref<8x1xf32, #tpu.memory_space<vmem>>, %arg6: memref<8x1xf32, #tpu.memory_space<vmem>>, %arg7: memref<1x288xf32, #tpu.memory_space<vmem>>, %arg8: memref<1xf32, #tpu.memory_space<smem>>, %arg9: memref<16x256xf32, #tpu.memory_space<vmem>>, %arg10: memref<16x326xf32, #tpu.memory_space<vmem>>) attributes {dimension_semantics = [], scalar_prefetch = 0 : i64, scratch_operands = 1 : i64, tpu.core_type = #tpu.core_type<tc>} {
    %c0 = arith.constant 0 : index
    %c0_0 = arith.constant 0 : index
    %0 = vector.load %arg0[%c0, %c0_0] : memref<16x256xf32, #tpu.memory_space<vmem>>, vector<16x256xf32>
    %c0_1 = arith.constant 0 : index
    %c0_2 = arith.constant 0 : index
    %1 = vector.load %arg7[%c0_1, %c0_2] : memref<1x288xf32, #tpu.memory_space<vmem>>, vector<1x288xf32>
    %c0_3 = arith.constant 0 : index
    %2 = memref.load %arg8[%c0_3] : memref<1xf32, #tpu.memory_space<smem>>
    %cst = arith.constant 0.000000e+00 : f32
    %3 = vector.broadcast %cst : f32 to vector<16x326xf32>
    %c0_4 = arith.constant 0 : index
    %c0_5 = arith.constant 0 : index
    %4 = vector.load %arg10[%c0_4, %c0_5] : memref<16x326xf32, #tpu.memory_space<vmem>>, vector<16x326xf32>
    tpu.vector_store %arg10[%c0_4, %c0_5], %3 {strides = array<i32>} : memref<16x326xf32, #tpu.memory_space<vmem>>, vector<16x326xf32>,
    %5 = vector.extract_strided_slice %0 {offsets = [0, 0], sizes = [16, 16], strides = [1, 1]} : vector<16x256xf32> to vector<16x16xf32>
    %c0_6 = arith.constant 0 : index
    %c19 = arith.constant 19 : index
    %6 = vector.load %arg10[%c0_6, %c19] : memref<16x326xf32, #tpu.memory_space<vmem>>, vector<16x16xf32>
    tpu.vector_store %arg10[%c0_6, %c19], %5 {strides = array<i32>} : memref<16x326xf32, #tpu.memory_space<vmem>>, vector<16x16xf32>,
    %7 = vector.extract_strided_slice %0 {offsets = [0, 16], sizes = [16, 16], strides = [1, 1]} : vector<16x256xf32> to vector<16x16xf32>
    %c0_7 = arith.constant 0 : index
    %c37 = arith.constant 37 : index
    %8 = vector.load %arg10[%c0_7, %c37] : memref<16x326xf32, #tpu.memory_space<vmem>>, vector<16x16xf32>
    tpu.vector_store %arg10[%c0_7, %c37], %7 {strides = array<i32>} : memref<16x326xf32, #tpu.memory_space<vmem>>, vector<16x16xf32>,
    %9 = vector.extract_strided_slice %0 {offsets = [0, 32], sizes = [16, 16], strides = [1, 1]} : vector<16x256xf32> to vector<16x16xf32>
    %c0_8 = arith.constant 0 : index
    %c55 = arith.constant 55 : index
    %10 = vector.load %arg10[%c0_8, %c55] : memref<16x326xf32, #tpu.memory_space<vmem>>, vector<16x16xf32>
    tpu.vector_store %arg10[%c0_8, %c55], %9 {strides = array<i32>} : memref<16x326xf32, #tpu.memory_space<vmem>>, vector<16x16xf32>,
    %11 = vector.extract_strided_slice %0 {offsets = [0, 48], sizes = [16, 16], strides = [1, 1]} : vector<16x256xf32> to vector<16x16xf32>
    %c0_9 = arith.constant 0 : index
    %c73 = arith.constant 73 : index
    %12 = vector.load %arg10[%c0_9, %c73] : memref<16x326xf32, #tpu.memory_space<vmem>>, vector<16x16xf32>
    tpu.vector_store %arg10[%c0_9, %c73], %11 {strides = array<i32>} : memref<16x326xf32, #tpu.memory_space<vmem>>, vector<16x16xf32>,
    %13 = vector.extract_strided_slice %0 {offsets = [0, 64], sizes = [16, 16], strides = [1, 1]} : vector<16x256xf32> to vector<16x16xf32>
    %c0_10 = arith.constant 0 : index
    %c91 = arith.constant 91 : index
    %14 = vector.load %arg10[%c0_10, %c91] : memref<16x326xf32, #tpu.memory_space<vmem>>, vector<16x16xf32>
    tpu.vector_store %arg10[%c0_10, %c91], %13 {strides = array<i32>} : memref<16x326xf32, #tpu.memory_space<vmem>>, vector<16x16xf32>,
    %15 = vector.extract_strided_slice %0 {offsets = [0, 80], sizes = [16, 16], strides = [1, 1]} : vector<16x256xf32> to vector<16x16xf32>
    %c0_11 = arith.constant 0 : index
    %c109 = arith.constant 109 : index
    %16 = vector.load %arg10[%c0_11, %c109] : memref<16x326xf32, #tpu.memory_space<vmem>>, vector<16x16xf32>
    tpu.vector_store %arg10[%c0_11, %c109], %15 {strides = array<i32>} : memref<16x326xf32, #tpu.memory_space<vmem>>, vector<16x16xf32>,
    %17 = vector.extract_strided_slice %0 {offsets = [0, 96], sizes = [16, 16], strides = [1, 1]} : vector<16x256xf32> to vector<16x16xf32>
    %c0_12 = arith.constant 0 : index
    %c127 = arith.constant 127 : index
    %18 = vector.load %arg10[%c0_12, %c127] : memref<16x326xf32, #tpu.memory_space<vmem>>, vector<16x16xf32>
    tpu.vector_store %arg10[%c0_12, %c127], %17 {strides = array<i32>} : memref<16x326xf32, #tpu.memory_space<vmem>>, vector<16x16xf32>,
    %19 = vector.extract_strided_slice %0 {offsets = [0, 112], sizes = [16, 16], strides = [1, 1]} : vector<16x256xf32> to vector<16x16xf32>
    %c0_13 = arith.constant 0 : index
    %c145 = arith.constant 145 : index
    %20 = vector.load %arg10[%c0_13, %c145] : memref<16x326xf32, #tpu.memory_space<vmem>>, vector<16x16xf32>
    tpu.vector_store %arg10[%c0_13, %c145], %19 {strides = array<i32>} : memref<16x326xf32, #tpu.memory_space<vmem>>, vector<16x16xf32>,
    %21 = vector.extract_strided_slice %0 {offsets = [0, 128], sizes = [16, 16], strides = [1, 1]} : vector<16x256xf32> to vector<16x16xf32>
    %c0_14 = arith.constant 0 : index
    %c163 = arith.constant 163 : index
    %22 = vector.load %arg10[%c0_14, %c163] : memref<16x326xf32, #tpu.memory_space<vmem>>, vector<16x16xf32>
    tpu.vector_store %arg10[%c0_14, %c163], %21 {strides = array<i32>} : memref<16x326xf32, #tpu.memory_space<vmem>>, vector<16x16xf32>,
    %23 = vector.extract_strided_slice %0 {offsets = [0, 144], sizes = [16, 16], strides = [1, 1]} : vector<16x256xf32> to vector<16x16xf32>
    %c0_15 = arith.constant 0 : index
    %c181 = arith.constant 181 : index
    %24 = vector.load %arg10[%c0_15, %c181] : memref<16x326xf32, #tpu.memory_space<vmem>>, vector<16x16xf32>
    tpu.vector_store %arg10[%c0_15, %c181], %23 {strides = array<i32>} : memref<16x326xf32, #tpu.memory_space<vmem>>, vector<16x16xf32>,
    %25 = vector.extract_strided_slice %0 {offsets = [0, 160], sizes = [16, 16], strides = [1, 1]} : vector<16x256xf32> to vector<16x16xf32>
    %c0_16 = arith.constant 0 : index
    %c199 = arith.constant 199 : index
    %26 = vector.load %arg10[%c0_16, %c199] : memref<16x326xf32, #tpu.memory_space<vmem>>, vector<16x16xf32>
    tpu.vector_store %arg10[%c0_16, %c199], %25 {strides = array<i32>} : memref<16x326xf32, #tpu.memory_space<vmem>>, vector<16x16xf32>,
    %27 = vector.extract_strided_slice %0 {offsets = [0, 176], sizes = [16, 16], strides = [1, 1]} : vector<16x256xf32> to vector<16x16xf32>
    %c0_17 = arith.constant 0 : index
    %c217 = arith.constant 217 : index
    %28 = vector.load %arg10[%c0_17, %c217] : memref<16x326xf32, #tpu.memory_space<vmem>>, vector<16x16xf32>
    tpu.vector_store %arg10[%c0_17, %c217], %27 {strides = array<i32>} : memref<16x326xf32, #tpu.memory_space<vmem>>, vector<16x16xf32>,
    %29 = vector.extract_strided_slice %0 {offsets = [0, 192], sizes = [16, 16], strides = [1, 1]} : vector<16x256xf32> to vector<16x16xf32>
    %c0_18 = arith.constant 0 : index
    %c235 = arith.constant 235 : index
    %30 = vector.load %arg10[%c0_18, %c235] : memref<16x326xf32, #tpu.memory_space<vmem>>, vector<16x16xf32>
    tpu.vector_store %arg10[%c0_18, %c235], %29 {strides = array<i32>} : memref<16x326xf32, #tpu.memory_space<vmem>>, vector<16x16xf32>,
    %31 = vector.extract_strided_slice %0 {offsets = [0, 208], sizes = [16, 16], strides = [1, 1]} : vector<16x256xf32> to vector<16x16xf32>
    %c0_19 = arith.constant 0 : index
    %c253 = arith.constant 253 : index
    %32 = vector.load %arg10[%c0_19, %c253] : memref<16x326xf32, #tpu.memory_space<vmem>>, vector<16x16xf32>
    tpu.vector_store %arg10[%c0_19, %c253], %31 {strides = array<i32>} : memref<16x326xf32, #tpu.memory_space<vmem>>, vector<16x16xf32>,
    %33 = vector.extract_strided_slice %0 {offsets = [0, 224], sizes = [16, 16], strides = [1, 1]} : vector<16x256xf32> to vector<16x16xf32>
    %c0_20 = arith.constant 0 : index
    %c271 = arith.constant 271 : index
    %34 = vector.load %arg10[%c0_20, %c271] : memref<16x326xf32, #tpu.memory_space<vmem>>, vector<16x16xf32>
    tpu.vector_store %arg10[%c0_20, %c271], %33 {strides = array<i32>} : memref<16x326xf32, #tpu.memory_space<vmem>>, vector<16x16xf32>,
    %35 = vector.extract_strided_slice %0 {offsets = [0, 240], sizes = [16, 16], strides = [1, 1]} : vector<16x256xf32> to vector<16x16xf32>
    %c0_21 = arith.constant 0 : index
    %c289 = arith.constant 289 : index
    %36 = vector.load %arg10[%c0_21, %c289] : memref<16x326xf32, #tpu.memory_space<vmem>>, vector<16x16xf32>
    tpu.vector_store %arg10[%c0_21, %c289], %35 {strides = array<i32>} : memref<16x326xf32, #tpu.memory_space<vmem>>, vector<16x16xf32>,
    %c0_22 = arith.constant 0 : index
    %c0_23 = arith.constant 0 : index
    %37 = vector.load %arg10[%c0_22, %c0_23] : memref<16x326xf32, #tpu.memory_space<vmem>>, vector<16x326xf32>
    %c0_24 = arith.constant 0 : index
    %c0_25 = arith.constant 0 : index
    %38 = vector.load %arg1[%c0_24, %c0_25] : memref<8x72xf32, #tpu.memory_space<vmem>>, vector<8x72xf32>
    %39 = vector.extract_strided_slice %37 {offsets = [0, 0], sizes = [8, 326], strides = [1, 1]} : vector<16x326xf32> to vector<8x326xf32>
    %40 = vector.extract_strided_slice %39 {offsets = [0, 0], sizes = [8, 288], strides = [1, 1]} : vector<8x326xf32> to vector<8x288xf32>
    %41 = vector.extract_strided_slice %39 {offsets = [0, 1], sizes = [8, 288], strides = [1, 1]} : vector<8x326xf32> to vector<8x288xf32>
    %42 = vector.extract_strided_slice %39 {offsets = [0, 2], sizes = [8, 288], strides = [1, 1]} : vector<8x326xf32> to vector<8x288xf32>
    %43 = vector.extract_strided_slice %39 {offsets = [0, 18], sizes = [8, 288], strides = [1, 1]} : vector<8x326xf32> to vector<8x288xf32>
    %44 = vector.extract_strided_slice %39 {offsets = [0, 19], sizes = [8, 288], strides = [1, 1]} : vector<8x326xf32> to vector<8x288xf32>
    %45 = vector.extract_strided_slice %39 {offsets = [0, 20], sizes = [8, 288], strides = [1, 1]} : vector<8x326xf32> to vector<8x288xf32>
    %46 = vector.extract_strided_slice %39 {offsets = [0, 36], sizes = [8, 288], strides = [1, 1]} : vector<8x326xf32> to vector<8x288xf32>
    %47 = vector.extract_strided_slice %39 {offsets = [0, 37], sizes = [8, 288], strides = [1, 1]} : vector<8x326xf32> to vector<8x288xf32>
    %48 = vector.extract_strided_slice %39 {offsets = [0, 38], sizes = [8, 288], strides = [1, 1]} : vector<8x326xf32> to vector<8x288xf32>
    %49 = tpu.concatenate %40, %41, %42, %43, %44, %45, %46, %47, %48 in 0 : vector<8x288xf32>, vector<8x288xf32>, vector<8x288xf32>, vector<8x288xf32>, vector<8x288xf32>, vector<8x288xf32>, vector<8x288xf32>, vector<8x288xf32>, vector<8x288xf32> -> vector<72x288xf32>
    %cst_26 = arith.constant dense<0.000000e+00> : vector<8x288xf32>
    %50 = tpu.matmul %38, %49, %cst_26 {dimension_numbers = #tpu.dot_dimension_numbers<[1], [0], [0], [1], [0, 0, 1, 1], [], []>} : vector<8x72xf32>, vector<72x288xf32>, vector<8x288xf32> -> vector<8x288xf32>
    %51 = vector.extract_strided_slice %37 {offsets = [8, 0], sizes = [8, 326], strides = [1, 1]} : vector<16x326xf32> to vector<8x326xf32>
    %52 = vector.extract_strided_slice %51 {offsets = [0, 0], sizes = [8, 288], strides = [1, 1]} : vector<8x326xf32> to vector<8x288xf32>
    %53 = vector.extract_strided_slice %51 {offsets = [0, 1], sizes = [8, 288], strides = [1, 1]} : vector<8x326xf32> to vector<8x288xf32>
    %54 = vector.extract_strided_slice %51 {offsets = [0, 2], sizes = [8, 288], strides = [1, 1]} : vector<8x326xf32> to vector<8x288xf32>
    %55 = vector.extract_strided_slice %51 {offsets = [0, 18], sizes = [8, 288], strides = [1, 1]} : vector<8x326xf32> to vector<8x288xf32>
    %56 = vector.extract_strided_slice %51 {offsets = [0, 19], sizes = [8, 288], strides = [1, 1]} : vector<8x326xf32> to vector<8x288xf32>
    %57 = vector.extract_strided_slice %51 {offsets = [0, 20], sizes = [8, 288], strides = [1, 1]} : vector<8x326xf32> to vector<8x288xf32>
    %58 = vector.extract_strided_slice %51 {offsets = [0, 36], sizes = [8, 288], strides = [1, 1]} : vector<8x326xf32> to vector<8x288xf32>
    %59 = vector.extract_strided_slice %51 {offsets = [0, 37], sizes = [8, 288], strides = [1, 1]} : vector<8x326xf32> to vector<8x288xf32>
    %60 = vector.extract_strided_slice %51 {offsets = [0, 38], sizes = [8, 288], strides = [1, 1]} : vector<8x326xf32> to vector<8x288xf32>
    %61 = tpu.concatenate %52, %53, %54, %55, %56, %57, %58, %59, %60 in 0 : vector<8x288xf32>, vector<8x288xf32>, vector<8x288xf32>, vector<8x288xf32>, vector<8x288xf32>, vector<8x288xf32>, vector<8x288xf32>, vector<8x288xf32>, vector<8x288xf32> -> vector<72x288xf32>
    %cst_27 = arith.constant dense<0.000000e+00> : vector<8x288xf32>
    %62 = tpu.matmul %38, %61, %cst_27 {dimension_numbers = #tpu.dot_dimension_numbers<[1], [0], [0], [1], [0, 0, 1, 1], [], []>} : vector<8x72xf32>, vector<72x288xf32>, vector<8x288xf32> -> vector<8x288xf32>
    %63 = tpu.concatenate %50, %62 in 0 : vector<8x288xf32>, vector<8x288xf32> -> vector<16x288xf32>
    %64 = vector.broadcast %1 : vector<1x288xf32> to vector<16x288xf32>
    %65 = arith.mulf %63, %64 : vector<16x288xf32>
    %cst_28 = arith.constant dense<0.000000e+00> : vector<16xf32>
    %66 = vector.multi_reduction <add>, %65, %cst_28 [1] : vector<16x288xf32> to vector<16xf32>
    %67 = vector.shape_cast %66 : vector<16xf32> to vector<16x1xf32>
    %68 = arith.mulf %65, %65 : vector<16x288xf32>
    %cst_29 = arith.constant dense<0.000000e+00> : vector<16xf32>
    %69 = vector.multi_reduction <add>, %68, %cst_29 [1] : vector<16x288xf32> to vector<16xf32>
    %70 = vector.shape_cast %69 : vector<16xf32> to vector<16x1xf32>
    %71 = vector.extract_strided_slice %67 {offsets = [0, 0], sizes = [8, 1], strides = [1, 1]} : vector<16x1xf32> to vector<8x1xf32>
    %72 = vector.extract_strided_slice %70 {offsets = [0, 0], sizes = [8, 1], strides = [1, 1]} : vector<16x1xf32> to vector<8x1xf32>
    %73 = vector.extract_strided_slice %67 {offsets = [8, 0], sizes = [8, 1], strides = [1, 1]} : vector<16x1xf32> to vector<8x1xf32>
    %74 = arith.addf %71, %73 : vector<8x1xf32>
    %75 = vector.extract_strided_slice %70 {offsets = [8, 0], sizes = [8, 1], strides = [1, 1]} : vector<16x1xf32> to vector<8x1xf32>
    %76 = arith.addf %72, %75 : vector<8x1xf32>
    %cst_30 = arith.constant 0.001953125 : f32
    %77 = vector.broadcast %cst_30 : f32 to vector<8x1xf32>
    %78 = arith.mulf %74, %77 : vector<8x1xf32>
    %cst_31 = arith.constant 0.001953125 : f32
    %79 = vector.broadcast %cst_31 : f32 to vector<8x1xf32>
    %80 = arith.mulf %76, %79 : vector<8x1xf32>
    %81 = arith.mulf %78, %78 : vector<8x1xf32>
    %82 = arith.subf %80, %81 : vector<8x1xf32>
    %c0_32 = arith.constant 0 : index
    %c0_33 = arith.constant 0 : index
    %83 = vector.load %arg3[%c0_32, %c0_33] : memref<8x1xf32, #tpu.memory_space<vmem>>, vector<8x1xf32>
    %cst_34 = arith.constant 9.99999974E-6 : f32
    %84 = vector.broadcast %cst_34 : f32 to vector<8x1xf32>
    %85 = arith.addf %82, %84 : vector<8x1xf32>
    %86 = math.rsqrt %85 : vector<8x1xf32>
    %87 = arith.mulf %83, %86 : vector<8x1xf32>
    %c0_35 = arith.constant 0 : index
    %c0_36 = arith.constant 0 : index
    %88 = vector.load %arg4[%c0_35, %c0_36] : memref<8x1xf32, #tpu.memory_space<vmem>>, vector<8x1xf32>
    %89 = arith.mulf %78, %87 : vector<8x1xf32>
    %90 = arith.subf %88, %89 : vector<8x1xf32>
    %91 = tpu.concatenate %87, %87 in 0 : vector<8x1xf32>, vector<8x1xf32> -> vector<16x1xf32>
    %92 = tpu.concatenate %90, %90 in 0 : vector<8x1xf32>, vector<8x1xf32> -> vector<16x1xf32>
    %93 = vector.broadcast %91 : vector<16x1xf32> to vector<16x288xf32>
    %94 = arith.mulf %63, %93 : vector<16x288xf32>
    %95 = vector.broadcast %92 : vector<16x1xf32> to vector<16x288xf32>
    %96 = arith.addf %94, %95 : vector<16x288xf32>
    %cst_37 = arith.constant 0.000000e+00 : f32
    %97 = vector.broadcast %cst_37 : f32 to vector<16x288xf32>
    %98 = arith.cmpf oge, %96, %97 : vector<16x288xf32>
    %99 = vector.broadcast %2 : f32 to vector<16x288xf32>
    %100 = arith.mulf %99, %96 : vector<16x288xf32>
    %101 = arith.select %98, %96, %100 : vector<16x288xi1>, vector<16x288xf32>
    %cst_38 = arith.constant 0.000000e+00 : f32
    %102 = vector.broadcast %cst_38 : f32 to vector<16x326xf32>
    %c0_39 = arith.constant 0 : index
    %c0_40 = arith.constant 0 : index
    %103 = vector.load %arg10[%c0_39, %c0_40] : memref<16x326xf32, #tpu.memory_space<vmem>>, vector<16x326xf32>
    tpu.vector_store %arg10[%c0_39, %c0_40], %102 {strides = array<i32>} : memref<16x326xf32, #tpu.memory_space<vmem>>, vector<16x326xf32>,
    %104 = vector.broadcast %1 : vector<1x288xf32> to vector<16x288xf32>
    %105 = arith.mulf %101, %104 : vector<16x288xf32>
    %c0_41 = arith.constant 0 : index
    %c19_42 = arith.constant 19 : index
    %106 = vector.load %arg10[%c0_41, %c19_42] : memref<16x326xf32, #tpu.memory_space<vmem>>, vector<16x288xf32>
    tpu.vector_store %arg10[%c0_41, %c19_42], %105 {strides = array<i32>} : memref<16x326xf32, #tpu.memory_space<vmem>>, vector<16x288xf32>,
    %c0_43 = arith.constant 0 : index
    %c0_44 = arith.constant 0 : index
    %107 = vector.load %arg10[%c0_43, %c0_44] : memref<16x326xf32, #tpu.memory_space<vmem>>, vector<16x326xf32>
    %c0_45 = arith.constant 0 : index
    %c0_46 = arith.constant 0 : index
    %108 = vector.load %arg2[%c0_45, %c0_46] : memref<8x72xf32, #tpu.memory_space<vmem>>, vector<8x72xf32>
    %109 = vector.extract_strided_slice %107 {offsets = [0, 0], sizes = [8, 326], strides = [1, 1]} : vector<16x326xf32> to vector<8x326xf32>
    %110 = vector.extract_strided_slice %109 {offsets = [0, 0], sizes = [8, 288], strides = [1, 1]} : vector<8x326xf32> to vector<8x288xf32>
    %111 = vector.extract_strided_slice %109 {offsets = [0, 1], sizes = [8, 288], strides = [1, 1]} : vector<8x326xf32> to vector<8x288xf32>
    %112 = vector.extract_strided_slice %109 {offsets = [0, 2], sizes = [8, 288], strides = [1, 1]} : vector<8x326xf32> to vector<8x288xf32>
    %113 = vector.extract_strided_slice %109 {offsets = [0, 18], sizes = [8, 288], strides = [1, 1]} : vector<8x326xf32> to vector<8x288xf32>
    %114 = vector.extract_strided_slice %109 {offsets = [0, 19], sizes = [8, 288], strides = [1, 1]} : vector<8x326xf32> to vector<8x288xf32>
    %115 = vector.extract_strided_slice %109 {offsets = [0, 20], sizes = [8, 288], strides = [1, 1]} : vector<8x326xf32> to vector<8x288xf32>
    %116 = vector.extract_strided_slice %109 {offsets = [0, 36], sizes = [8, 288], strides = [1, 1]} : vector<8x326xf32> to vector<8x288xf32>
    %117 = vector.extract_strided_slice %109 {offsets = [0, 37], sizes = [8, 288], strides = [1, 1]} : vector<8x326xf32> to vector<8x288xf32>
    %118 = vector.extract_strided_slice %109 {offsets = [0, 38], sizes = [8, 288], strides = [1, 1]} : vector<8x326xf32> to vector<8x288xf32>
    %119 = tpu.concatenate %110, %111, %112, %113, %114, %115, %116, %117, %118 in 0 : vector<8x288xf32>, vector<8x288xf32>, vector<8x288xf32>, vector<8x288xf32>, vector<8x288xf32>, vector<8x288xf32>, vector<8x288xf32>, vector<8x288xf32>, vector<8x288xf32> -> vector<72x288xf32>
    %cst_47 = arith.constant dense<0.000000e+00> : vector<8x288xf32>
    %120 = tpu.matmul %108, %119, %cst_47 {dimension_numbers = #tpu.dot_dimension_numbers<[1], [0], [0], [1], [0, 0, 1, 1], [], []>} : vector<8x72xf32>, vector<72x288xf32>, vector<8x288xf32> -> vector<8x288xf32>
    %121 = vector.extract_strided_slice %107 {offsets = [8, 0], sizes = [8, 326], strides = [1, 1]} : vector<16x326xf32> to vector<8x326xf32>
    %122 = vector.extract_strided_slice %121 {offsets = [0, 0], sizes = [8, 288], strides = [1, 1]} : vector<8x326xf32> to vector<8x288xf32>
    %123 = vector.extract_strided_slice %121 {offsets = [0, 1], sizes = [8, 288], strides = [1, 1]} : vector<8x326xf32> to vector<8x288xf32>
    %124 = vector.extract_strided_slice %121 {offsets = [0, 2], sizes = [8, 288], strides = [1, 1]} : vector<8x326xf32> to vector<8x288xf32>
    %125 = vector.extract_strided_slice %121 {offsets = [0, 18], sizes = [8, 288], strides = [1, 1]} : vector<8x326xf32> to vector<8x288xf32>
    %126 = vector.extract_strided_slice %121 {offsets = [0, 19], sizes = [8, 288], strides = [1, 1]} : vector<8x326xf32> to vector<8x288xf32>
    %127 = vector.extract_strided_slice %121 {offsets = [0, 20], sizes = [8, 288], strides = [1, 1]} : vector<8x326xf32> to vector<8x288xf32>
    %128 = vector.extract_strided_slice %121 {offsets = [0, 36], sizes = [8, 288], strides = [1, 1]} : vector<8x326xf32> to vector<8x288xf32>
    %129 = vector.extract_strided_slice %121 {offsets = [0, 37], sizes = [8, 288], strides = [1, 1]} : vector<8x326xf32> to vector<8x288xf32>
    %130 = vector.extract_strided_slice %121 {offsets = [0, 38], sizes = [8, 288], strides = [1, 1]} : vector<8x326xf32> to vector<8x288xf32>
    %131 = tpu.concatenate %122, %123, %124, %125, %126, %127, %128, %129, %130 in 0 : vector<8x288xf32>, vector<8x288xf32>, vector<8x288xf32>, vector<8x288xf32>, vector<8x288xf32>, vector<8x288xf32>, vector<8x288xf32>, vector<8x288xf32>, vector<8x288xf32> -> vector<72x288xf32>
    %cst_48 = arith.constant dense<0.000000e+00> : vector<8x288xf32>
    %132 = tpu.matmul %108, %131, %cst_48 {dimension_numbers = #tpu.dot_dimension_numbers<[1], [0], [0], [1], [0, 0, 1, 1], [], []>} : vector<8x72xf32>, vector<72x288xf32>, vector<8x288xf32> -> vector<8x288xf32>
    %133 = tpu.concatenate %120, %132 in 0 : vector<8x288xf32>, vector<8x288xf32> -> vector<16x288xf32>
    %134 = vector.broadcast %1 : vector<1x288xf32> to vector<16x288xf32>
    %135 = arith.mulf %133, %134 : vector<16x288xf32>
    %cst_49 = arith.constant dense<0.000000e+00> : vector<16xf32>
    %136 = vector.multi_reduction <add>, %135, %cst_49 [1] : vector<16x288xf32> to vector<16xf32>
    %137 = vector.shape_cast %136 : vector<16xf32> to vector<16x1xf32>
    %138 = arith.mulf %135, %135 : vector<16x288xf32>
    %cst_50 = arith.constant dense<0.000000e+00> : vector<16xf32>
    %139 = vector.multi_reduction <add>, %138, %cst_50 [1] : vector<16x288xf32> to vector<16xf32>
    %140 = vector.shape_cast %139 : vector<16xf32> to vector<16x1xf32>
    %141 = vector.extract_strided_slice %137 {offsets = [0, 0], sizes = [8, 1], strides = [1, 1]} : vector<16x1xf32> to vector<8x1xf32>
    %142 = vector.extract_strided_slice %140 {offsets = [0, 0], sizes = [8, 1], strides = [1, 1]} : vector<16x1xf32> to vector<8x1xf32>
    %143 = vector.extract_strided_slice %137 {offsets = [8, 0], sizes = [8, 1], strides = [1, 1]} : vector<16x1xf32> to vector<8x1xf32>
    %144 = arith.addf %141, %143 : vector<8x1xf32>
    %145 = vector.extract_strided_slice %140 {offsets = [8, 0], sizes = [8, 1], strides = [1, 1]} : vector<16x1xf32> to vector<8x1xf32>
    %146 = arith.addf %142, %145 : vector<8x1xf32>
    %cst_51 = arith.constant 0.001953125 : f32
    %147 = vector.broadcast %cst_51 : f32 to vector<8x1xf32>
    %148 = arith.mulf %144, %147 : vector<8x1xf32>
    %cst_52 = arith.constant 0.001953125 : f32
    %149 = vector.broadcast %cst_52 : f32 to vector<8x1xf32>
    %150 = arith.mulf %146, %149 : vector<8x1xf32>
    %151 = arith.mulf %148, %148 : vector<8x1xf32>
    %152 = arith.subf %150, %151 : vector<8x1xf32>
    %c0_53 = arith.constant 0 : index
    %c0_54 = arith.constant 0 : index
    %153 = vector.load %arg5[%c0_53, %c0_54] : memref<8x1xf32, #tpu.memory_space<vmem>>, vector<8x1xf32>
    %cst_55 = arith.constant 9.99999974E-6 : f32
    %154 = vector.broadcast %cst_55 : f32 to vector<8x1xf32>
    %155 = arith.addf %152, %154 : vector<8x1xf32>
    %156 = math.rsqrt %155 : vector<8x1xf32>
    %157 = arith.mulf %153, %156 : vector<8x1xf32>
    %c0_56 = arith.constant 0 : index
    %c0_57 = arith.constant 0 : index
    %158 = vector.load %arg6[%c0_56, %c0_57] : memref<8x1xf32, #tpu.memory_space<vmem>>, vector<8x1xf32>
    %159 = arith.mulf %148, %157 : vector<8x1xf32>
    %160 = arith.subf %158, %159 : vector<8x1xf32>
    %161 = tpu.concatenate %157, %157 in 0 : vector<8x1xf32>, vector<8x1xf32> -> vector<16x1xf32>
    %162 = tpu.concatenate %160, %160 in 0 : vector<8x1xf32>, vector<8x1xf32> -> vector<16x1xf32>
    %163 = vector.broadcast %161 : vector<16x1xf32> to vector<16x288xf32>
    %164 = arith.mulf %133, %163 : vector<16x288xf32>
    %165 = vector.broadcast %162 : vector<16x1xf32> to vector<16x288xf32>
    %166 = arith.addf %164, %165 : vector<16x288xf32>
    %167 = vector.extract_strided_slice %166 {offsets = [0, 0], sizes = [16, 16], strides = [1, 1]} : vector<16x288xf32> to vector<16x16xf32>
    %168 = vector.extract_strided_slice %0 {offsets = [0, 0], sizes = [16, 16], strides = [1, 1]} : vector<16x256xf32> to vector<16x16xf32>
    %169 = arith.addf %167, %168 : vector<16x16xf32>
    %c0_58 = arith.constant 0 : index
    %c0_59 = arith.constant 0 : index
    %170 = vector.load %arg9[%c0_58, %c0_59] : memref<16x256xf32, #tpu.memory_space<vmem>>, vector<16x16xf32>
    tpu.vector_store %arg9[%c0_58, %c0_59], %169 {strides = array<i32>} : memref<16x256xf32, #tpu.memory_space<vmem>>, vector<16x16xf32>,
    %171 = vector.extract_strided_slice %166 {offsets = [0, 18], sizes = [16, 16], strides = [1, 1]} : vector<16x288xf32> to vector<16x16xf32>
    %172 = vector.extract_strided_slice %0 {offsets = [0, 16], sizes = [16, 16], strides = [1, 1]} : vector<16x256xf32> to vector<16x16xf32>
    %173 = arith.addf %171, %172 : vector<16x16xf32>
    %c0_60 = arith.constant 0 : index
    %c16 = arith.constant 16 : index
    %174 = vector.load %arg9[%c0_60, %c16] : memref<16x256xf32, #tpu.memory_space<vmem>>, vector<16x16xf32>
    tpu.vector_store %arg9[%c0_60, %c16], %173 {strides = array<i32>} : memref<16x256xf32, #tpu.memory_space<vmem>>, vector<16x16xf32>,
    %175 = vector.extract_strided_slice %166 {offsets = [0, 36], sizes = [16, 16], strides = [1, 1]} : vector<16x288xf32> to vector<16x16xf32>
    %176 = vector.extract_strided_slice %0 {offsets = [0, 32], sizes = [16, 16], strides = [1, 1]} : vector<16x256xf32> to vector<16x16xf32>
    %177 = arith.addf %175, %176 : vector<16x16xf32>
    %c0_61 = arith.constant 0 : index
    %c32 = arith.constant 32 : index
    %178 = vector.load %arg9[%c0_61, %c32] : memref<16x256xf32, #tpu.memory_space<vmem>>, vector<16x16xf32>
    tpu.vector_store %arg9[%c0_61, %c32], %177 {strides = array<i32>} : memref<16x256xf32, #tpu.memory_space<vmem>>, vector<16x16xf32>,
    %179 = vector.extract_strided_slice %166 {offsets = [0, 54], sizes = [16, 16], strides = [1, 1]} : vector<16x288xf32> to vector<16x16xf32>
    %180 = vector.extract_strided_slice %0 {offsets = [0, 48], sizes = [16, 16], strides = [1, 1]} : vector<16x256xf32> to vector<16x16xf32>
    %181 = arith.addf %179, %180 : vector<16x16xf32>
    %c0_62 = arith.constant 0 : index
    %c48 = arith.constant 48 : index
    %182 = vector.load %arg9[%c0_62, %c48] : memref<16x256xf32, #tpu.memory_space<vmem>>, vector<16x16xf32>
    tpu.vector_store %arg9[%c0_62, %c48], %181 {strides = array<i32>} : memref<16x256xf32, #tpu.memory_space<vmem>>, vector<16x16xf32>,
    %183 = vector.extract_strided_slice %166 {offsets = [0, 72], sizes = [16, 16], strides = [1, 1]} : vector<16x288xf32> to vector<16x16xf32>
    %184 = vector.extract_strided_slice %0 {offsets = [0, 64], sizes = [16, 16], strides = [1, 1]} : vector<16x256xf32> to vector<16x16xf32>
    %185 = arith.addf %183, %184 : vector<16x16xf32>
    %c0_63 = arith.constant 0 : index
    %c64 = arith.constant 64 : index
    %186 = vector.load %arg9[%c0_63, %c64] : memref<16x256xf32, #tpu.memory_space<vmem>>, vector<16x16xf32>
    tpu.vector_store %arg9[%c0_63, %c64], %185 {strides = array<i32>} : memref<16x256xf32, #tpu.memory_space<vmem>>, vector<16x16xf32>,
    %187 = vector.extract_strided_slice %166 {offsets = [0, 90], sizes = [16, 16], strides = [1, 1]} : vector<16x288xf32> to vector<16x16xf32>
    %188 = vector.extract_strided_slice %0 {offsets = [0, 80], sizes = [16, 16], strides = [1, 1]} : vector<16x256xf32> to vector<16x16xf32>
    %189 = arith.addf %187, %188 : vector<16x16xf32>
    %c0_64 = arith.constant 0 : index
    %c80 = arith.constant 80 : index
    %190 = vector.load %arg9[%c0_64, %c80] : memref<16x256xf32, #tpu.memory_space<vmem>>, vector<16x16xf32>
    tpu.vector_store %arg9[%c0_64, %c80], %189 {strides = array<i32>} : memref<16x256xf32, #tpu.memory_space<vmem>>, vector<16x16xf32>,
    %191 = vector.extract_strided_slice %166 {offsets = [0, 108], sizes = [16, 16], strides = [1, 1]} : vector<16x288xf32> to vector<16x16xf32>
    %192 = vector.extract_strided_slice %0 {offsets = [0, 96], sizes = [16, 16], strides = [1, 1]} : vector<16x256xf32> to vector<16x16xf32>
    %193 = arith.addf %191, %192 : vector<16x16xf32>
    %c0_65 = arith.constant 0 : index
    %c96 = arith.constant 96 : index
    %194 = vector.load %arg9[%c0_65, %c96] : memref<16x256xf32, #tpu.memory_space<vmem>>, vector<16x16xf32>
    tpu.vector_store %arg9[%c0_65, %c96], %193 {strides = array<i32>} : memref<16x256xf32, #tpu.memory_space<vmem>>, vector<16x16xf32>,
    %195 = vector.extract_strided_slice %166 {offsets = [0, 126], sizes = [16, 16], strides = [1, 1]} : vector<16x288xf32> to vector<16x16xf32>
    %196 = vector.extract_strided_slice %0 {offsets = [0, 112], sizes = [16, 16], strides = [1, 1]} : vector<16x256xf32> to vector<16x16xf32>
    %197 = arith.addf %195, %196 : vector<16x16xf32>
    %c0_66 = arith.constant 0 : index
    %c112 = arith.constant 112 : index
    %198 = vector.load %arg9[%c0_66, %c112] : memref<16x256xf32, #tpu.memory_space<vmem>>, vector<16x16xf32>
    tpu.vector_store %arg9[%c0_66, %c112], %197 {strides = array<i32>} : memref<16x256xf32, #tpu.memory_space<vmem>>, vector<16x16xf32>,
    %199 = vector.extract_strided_slice %166 {offsets = [0, 144], sizes = [16, 16], strides = [1, 1]} : vector<16x288xf32> to vector<16x16xf32>
    %200 = vector.extract_strided_slice %0 {offsets = [0, 128], sizes = [16, 16], strides = [1, 1]} : vector<16x256xf32> to vector<16x16xf32>
    %201 = arith.addf %199, %200 : vector<16x16xf32>
    %c0_67 = arith.constant 0 : index
    %c128 = arith.constant 128 : index
    %202 = vector.load %arg9[%c0_67, %c128] : memref<16x256xf32, #tpu.memory_space<vmem>>, vector<16x16xf32>
    tpu.vector_store %arg9[%c0_67, %c128], %201 {strides = array<i32>} : memref<16x256xf32, #tpu.memory_space<vmem>>, vector<16x16xf32>,
    %203 = vector.extract_strided_slice %166 {offsets = [0, 162], sizes = [16, 16], strides = [1, 1]} : vector<16x288xf32> to vector<16x16xf32>
    %204 = vector.extract_strided_slice %0 {offsets = [0, 144], sizes = [16, 16], strides = [1, 1]} : vector<16x256xf32> to vector<16x16xf32>
    %205 = arith.addf %203, %204 : vector<16x16xf32>
    %c0_68 = arith.constant 0 : index
    %c144 = arith.constant 144 : index
    %206 = vector.load %arg9[%c0_68, %c144] : memref<16x256xf32, #tpu.memory_space<vmem>>, vector<16x16xf32>
    tpu.vector_store %arg9[%c0_68, %c144], %205 {strides = array<i32>} : memref<16x256xf32, #tpu.memory_space<vmem>>, vector<16x16xf32>,
    %207 = vector.extract_strided_slice %166 {offsets = [0, 180], sizes = [16, 16], strides = [1, 1]} : vector<16x288xf32> to vector<16x16xf32>
    %208 = vector.extract_strided_slice %0 {offsets = [0, 160], sizes = [16, 16], strides = [1, 1]} : vector<16x256xf32> to vector<16x16xf32>
    %209 = arith.addf %207, %208 : vector<16x16xf32>
    %c0_69 = arith.constant 0 : index
    %c160 = arith.constant 160 : index
    %210 = vector.load %arg9[%c0_69, %c160] : memref<16x256xf32, #tpu.memory_space<vmem>>, vector<16x16xf32>
    tpu.vector_store %arg9[%c0_69, %c160], %209 {strides = array<i32>} : memref<16x256xf32, #tpu.memory_space<vmem>>, vector<16x16xf32>,
    %211 = vector.extract_strided_slice %166 {offsets = [0, 198], sizes = [16, 16], strides = [1, 1]} : vector<16x288xf32> to vector<16x16xf32>
    %212 = vector.extract_strided_slice %0 {offsets = [0, 176], sizes = [16, 16], strides = [1, 1]} : vector<16x256xf32> to vector<16x16xf32>
    %213 = arith.addf %211, %212 : vector<16x16xf32>
    %c0_70 = arith.constant 0 : index
    %c176 = arith.constant 176 : index
    %214 = vector.load %arg9[%c0_70, %c176] : memref<16x256xf32, #tpu.memory_space<vmem>>, vector<16x16xf32>
    tpu.vector_store %arg9[%c0_70, %c176], %213 {strides = array<i32>} : memref<16x256xf32, #tpu.memory_space<vmem>>, vector<16x16xf32>,
    %215 = vector.extract_strided_slice %166 {offsets = [0, 216], sizes = [16, 16], strides = [1, 1]} : vector<16x288xf32> to vector<16x16xf32>
    %216 = vector.extract_strided_slice %0 {offsets = [0, 192], sizes = [16, 16], strides = [1, 1]} : vector<16x256xf32> to vector<16x16xf32>
    %217 = arith.addf %215, %216 : vector<16x16xf32>
    %c0_71 = arith.constant 0 : index
    %c192 = arith.constant 192 : index
    %218 = vector.load %arg9[%c0_71, %c192] : memref<16x256xf32, #tpu.memory_space<vmem>>, vector<16x16xf32>
    tpu.vector_store %arg9[%c0_71, %c192], %217 {strides = array<i32>} : memref<16x256xf32, #tpu.memory_space<vmem>>, vector<16x16xf32>,
    %219 = vector.extract_strided_slice %166 {offsets = [0, 234], sizes = [16, 16], strides = [1, 1]} : vector<16x288xf32> to vector<16x16xf32>
    %220 = vector.extract_strided_slice %0 {offsets = [0, 208], sizes = [16, 16], strides = [1, 1]} : vector<16x256xf32> to vector<16x16xf32>
    %221 = arith.addf %219, %220 : vector<16x16xf32>
    %c0_72 = arith.constant 0 : index
    %c208 = arith.constant 208 : index
    %222 = vector.load %arg9[%c0_72, %c208] : memref<16x256xf32, #tpu.memory_space<vmem>>, vector<16x16xf32>
    tpu.vector_store %arg9[%c0_72, %c208], %221 {strides = array<i32>} : memref<16x256xf32, #tpu.memory_space<vmem>>, vector<16x16xf32>,
    %223 = vector.extract_strided_slice %166 {offsets = [0, 252], sizes = [16, 16], strides = [1, 1]} : vector<16x288xf32> to vector<16x16xf32>
    %224 = vector.extract_strided_slice %0 {offsets = [0, 224], sizes = [16, 16], strides = [1, 1]} : vector<16x256xf32> to vector<16x16xf32>
    %225 = arith.addf %223, %224 : vector<16x16xf32>
    %c0_73 = arith.constant 0 : index
    %c224 = arith.constant 224 : index
    %226 = vector.load %arg9[%c0_73, %c224] : memref<16x256xf32, #tpu.memory_space<vmem>>, vector<16x16xf32>
    tpu.vector_store %arg9[%c0_73, %c224], %225 {strides = array<i32>} : memref<16x256xf32, #tpu.memory_space<vmem>>, vector<16x16xf32>,
    %227 = vector.extract_strided_slice %166 {offsets = [0, 270], sizes = [16, 16], strides = [1, 1]} : vector<16x288xf32> to vector<16x16xf32>
    %228 = vector.extract_strided_slice %0 {offsets = [0, 240], sizes = [16, 16], strides = [1, 1]} : vector<16x256xf32> to vector<16x16xf32>
    %229 = arith.addf %227, %228 : vector<16x16xf32>
    %c0_74 = arith.constant 0 : index
    %c240 = arith.constant 240 : index
    %230 = vector.load %arg9[%c0_74, %c240] : memref<16x256xf32, #tpu.memory_space<vmem>>, vector<16x16xf32>
    tpu.vector_store %arg9[%c0_74, %c240], %229 {strides = array<i32>} : memref<16x256xf32, #tpu.memory_space<vmem>>, vector<16x16xf32>,
    return
  }
}

</mosaic_0001>

<llo_original>
// kernel: residual_block.1
$region0: #{residual_block.1}
  #allocation0 [shape = 'u32[]', space=smem, size = 0x4, offset = 0x4, fixed_abs, tag = 'smem constant byte address 0x4 - core index']
  #allocation1 [shape = 'u32[144,128]{1,0:T(1,128)}', space=vmem, size = 0x12000, scoped, tag = 'internal scratch']
  #allocation2 [shape = 'f32[16,326]{1,0:T(8,128)}', space=vmem, size = 0x6000, scoped, tag = 'scratch operand']
  #allocation3 [shape = 'f32[1]{0:T(128)S(6)}', space=smem, size = 0x200, scoped, tag = 'scoped memory for residual_block.1']
  %s0 = inlined_call_operand.vmem [shape: f32[16,256], index: 0, kind: input, shape index: {}]
  %s1 = inlined_call_operand.vmem [shape: f32[8,72], index: 1, kind: input, shape index: {}]
  %s2 = inlined_call_operand.vmem [shape: f32[8,72], index: 2, kind: input, shape index: {}]
  %s3 = inlined_call_operand.vmem [shape: f32[8,1], index: 3, kind: input, shape index: {}]
  %s4 = inlined_call_operand.vmem [shape: f32[8,1], index: 4, kind: input, shape index: {}]
  %s5 = inlined_call_operand.vmem [shape: f32[8,1], index: 5, kind: input, shape index: {}]
  %s6 = inlined_call_operand.vmem [shape: f32[8,1], index: 6, kind: input, shape index: {}]
  %s7 = inlined_call_operand.vmem [shape: f32[1,288], index: 7, kind: input, shape index: {}]
  %s8 = inlined_call_operand.<no memory space> [shape: f32[1], index: 8, kind: input, shape index: {}]
  %s9 = inlined_call_operand.vmem [shape: f32[16,256], index: 9, kind: output, shape index: {}]
  %s10 = sld [smem:[#allocation0]]
  $region46: #{residual_block.1} parent=0
    _
  %s12 = ssub.s32 1, %s10
  %s13 = scalar_select 0, %s12, %s10
  %14 = sst [smem:[#allocation3]] %s8
  // Predicated region
  $region2: #{residual_block.1} parent=0 // pred_check
    _
  $region3: #{residual_block.1} parent=0 // pred_check_branch
    %16 = sbr.rel (0) target = $region5
  $region4: #{residual_block.1} parent=0 // pred_region
    _
  $region5: #{residual_block.1} parent=0 // pred_fallthru
    _
  // Predicated region
  $region6: #{residual_block.1} parent=0 // pred_check
    _
  $region7: #{residual_block.1} parent=0 // pred_check_branch
    %18 = sbr.rel (0) target = $region9
  $region8: #{residual_block.1} parent=0 // pred_region
    _
  $region9: #{residual_block.1} parent=0 // pred_fallthru
    _
  // Predicated region
  $region10: #{residual_block.1} parent=0 // pred_check
    _
  $region11: #{residual_block.1} parent=0 // pred_check_branch
    %20 = sbr.rel (0) target = $region13
  $region12: #{residual_block.1} parent=0 // pred_region
    _
  $region13: #{residual_block.1} parent=0 // pred_fallthru
    _
  // Predicated region
  $region14: #{residual_block.1} parent=0 // pred_check
    _
  $region15: #{residual_block.1} parent=0 // pred_check_branch
    %22 = sbr.rel (0) target = $region17
  $region16: #{residual_block.1} parent=0 // pred_region
    _
  $region17: #{residual_block.1} parent=0 // pred_fallthru
    _
  // Predicated region
  $region18: #{residual_block.1} parent=0 // pred_check
    _
  $region19: #{residual_block.1} parent=0 // pred_check_branch
    %24 = sbr.rel (0) target = $region21
  $region20: #{residual_block.1} parent=0 // pred_region
    _
  $region21: #{residual_block.1} parent=0 // pred_fallthru
    _
  // Predicated region
  $region22: #{residual_block.1} parent=0 // pred_check
    _
  $region23: #{residual_block.1} parent=0 // pred_check_branch
    %26 = sbr.rel (0) target = $region25
  $region24: #{residual_block.1} parent=0 // pred_region
    _
  $region25: #{residual_block.1} parent=0 // pred_fallthru
    _
  // Predicated region
  $region26: #{residual_block.1} parent=0 // pred_check
    _
  $region27: #{residual_block.1} parent=0 // pred_check_branch
    %28 = sbr.rel (0) target = $region29
  $region28: #{residual_block.1} parent=0 // pred_region
    _
  $region29: #{residual_block.1} parent=0 // pred_fallthru
    _
  // Predicated region
  $region30: #{residual_block.1} parent=0 // pred_check
    _
  $region31: #{residual_block.1} parent=0 // pred_check_branch
    %30 = sbr.rel (0) target = $region33
  $region32: #{residual_block.1} parent=0 // pred_region
    _
  $region33: #{residual_block.1} parent=0 // pred_fallthru
    _
  // Predicated region
  $region34: #{residual_block.1} parent=0 // pred_check
    _
  $region35: #{residual_block.1} parent=0 // pred_check_branch
    %32 = sbr.rel (0) target = $region37
  $region36: #{residual_block.1} parent=0 // pred_region
    _
  $region37: #{residual_block.1} parent=0 // pred_fallthru
    _
  %v33 = vld [vmem:[%s0] sm:$0xff]
  %v34 = vld [vmem:[%s0 + $0x8] sm:$0xff]
  %v35 = vld [vmem:[%s0 + $0x10] sm:$0xff]
  %v36 = vld [vmem:[%s0 + $0x18] sm:$0xff]
  %v37 = vld [vmem:[%s7] sm:$0x7]
  %s38 = sld [smem:[#allocation3]]
  %39 = vst [vmem:[#allocation2] sm:$0xff] 0.0
  %40 = vst [vmem:[#allocation2 + $0x8] sm:$0xff] 0.0
  %vm41 = vcmask 572416
  %42 = vst.msk [vmem:[#allocation2 + $0x10] sm:$0xff] %vm41, 0.0
  %43 = vst [vmem:[#allocation2 + $0x18] sm:$0xff] 0.0
  %44 = vst [vmem:[#allocation2 + $0x20] sm:$0xff] 0.0
  %45 = vst.msk [vmem:[#allocation2 + $0x28] sm:$0xff] %vm41, 0.0
  %48 = vrot.lane.b32.xlu0 %v33, 19
  %v49 = vpop.permute.xlu0 %48
  %50 = vrot.lane.b32.xlu0 %v35, 19
  %v51 = vpop.permute.xlu0 %50
  %vm54 = vcmask 285848
  %55 = vst.msk [vmem:[#allocation2] sm:$0xff] %vm54, %v49
  %56 = vst.msk [vmem:[#allocation2 + $0x18] sm:$0xff] %vm54, %v51
  %57 = vrot.lane.b32.xlu0 %v33, 21
  %v58 = vpop.permute.xlu0 %57
  %59 = vrot.lane.b32.xlu0 %v35, 21
  %v60 = vpop.permute.xlu0 %59
  %vm63 = vcmask 433448
  %64 = vst.msk [vmem:[#allocation2] sm:$0xff] %vm63, %v58
  %65 = vst.msk [vmem:[#allocation2 + $0x18] sm:$0xff] %vm63, %v60
  %66 = vrot.lane.b32.xlu0 %v33, 23
  %v67 = vpop.permute.xlu0 %66
  %68 = vrot.lane.b32.xlu0 %v35, 23
  %v69 = vpop.permute.xlu0 %68
  %vm72 = vcmask 581048
  %73 = vst.msk [vmem:[#allocation2] sm:$0xff] %vm72, %v67
  %74 = vst.msk [vmem:[#allocation2 + $0x18] sm:$0xff] %vm72, %v69
  %75 = vrot.lane.b32.xlu0 %v33, 25
  %v76 = vpop.permute.xlu0 %75
  %77 = vrot.lane.b32.xlu0 %v35, 25
  %v78 = vpop.permute.xlu0 %77
  %vm81 = vcmask 728648
  %82 = vst.msk [vmem:[#allocation2] sm:$0xff] %vm81, %v76
  %83 = vst.msk [vmem:[#allocation2 + $0x18] sm:$0xff] %vm81, %v78
  %84 = vrot.lane.b32.xlu0 %v33, 27
  %v85 = vpop.permute.xlu0 %84
  %86 = vrot.lane.b32.xlu0 %v35, 27
  %v87 = vpop.permute.xlu0 %86
  %vm90 = vcmask 876248
  %91 = vst.msk [vmem:[#allocation2] sm:$0xff] %vm90, %v85
  %92 = vst.msk [vmem:[#allocation2 + $0x18] sm:$0xff] %vm90, %v87
  %93 = vrot.lane.b32.xlu0 %v33, 29
  %v94 = vpop.permute.xlu0 %93
  %95 = vrot.lane.b32.xlu0 %v35, 29
  %v96 = vpop.permute.xlu0 %95
  %vm99 = vcmask 1023848
  %100 = vst.msk [vmem:[#allocation2] sm:$0xff] %vm99, %v94
  %101 = vst.msk [vmem:[#allocation2 + $0x18] sm:$0xff] %vm99, %v96
  %102 = vrot.lane.b32.xlu0 %v33, 31
  %v103 = vpop.permute.xlu0 %102
  %104 = vrot.lane.b32.xlu0 %v35, 31
  %v105 = vpop.permute.xlu0 %104
  %vm108 = vcmask 1048568
  %109 = vst.msk [vmem:[#allocation2] sm:$0xff] %vm108, %v103
  %vm110 = vcmask 121856
  %111 = vst.msk [vmem:[#allocation2 + $0x8] sm:$0xff] %vm110, %v103
  %112 = vst.msk [vmem:[#allocation2 + $0x18] sm:$0xff] %vm108, %v105
  %113 = vst.msk [vmem:[#allocation2 + $0x20] sm:$0xff] %vm110, %v105
  %114 = vrot.lane.b32.xlu0 %v33, 33
  %v115 = vpop.permute.xlu0 %114
  %116 = vrot.lane.b32.xlu0 %v35, 33
  %v117 = vpop.permute.xlu0 %116
  %vm120 = vcmask 269448
  %121 = vst.msk [vmem:[#allocation2 + $0x8] sm:$0xff] %vm120, %v115
  %122 = vst.msk [vmem:[#allocation2 + $0x20] sm:$0xff] %vm120, %v117
  %125 = vrot.lane.b32.xlu0 %v34, 35
  %v126 = vpop.permute.xlu0 %125
  %127 = vrot.lane.b32.xlu0 %v36, 35
  %v128 = vpop.permute.xlu0 %127
  %vm131 = vcmask 417048
  %132 = vst.msk [vmem:[#allocation2 + $0x8] sm:$0xff] %vm131, %v126
  %133 = vst.msk [vmem:[#allocation2 + $0x20] sm:$0xff] %vm131, %v128
  %134 = vrot.lane.b32.xlu0 %v34, 37
  %v135 = vpop.permute.xlu0 %134
  %136 = vrot.lane.b32.xlu0 %v36, 37
  %v137 = vpop.permute.xlu0 %136
  %vm140 = vcmask 564648
  %141 = vst.msk [vmem:[#allocation2 + $0x8] sm:$0xff] %vm140, %v135
  %142 = vst.msk [vmem:[#allocation2 + $0x20] sm:$0xff] %vm140, %v137
  %143 = vrot.lane.b32.xlu0 %v34, 39
  %v144 = vpop.permute.xlu0 %143
  %145 = vrot.lane.b32.xlu0 %v36, 39
  %v146 = vpop.permute.xlu0 %145
  %vm149 = vcmask 712248
  %150 = vst.msk [vmem:[#allocation2 + $0x8] sm:$0xff] %vm149, %v144
  %151 = vst.msk [vmem:[#allocation2 + $0x20] sm:$0xff] %vm149, %v146
  %152 = vrot.lane.b32.xlu0 %v34, 41
  %v153 = vpop.permute.xlu0 %152
  %154 = vrot.lane.b32.xlu0 %v36, 41
  %v155 = vpop.permute.xlu0 %154
  %vm158 = vcmask 859848
  %159 = vst.msk [vmem:[#allocation2 + $0x8] sm:$0xff] %vm158, %v153
  %160 = vst.msk [vmem:[#allocation2 + $0x20] sm:$0xff] %vm158, %v155
  %161 = vrot.lane.b32.xlu0 %v34, 43
  %v162 = vpop.permute.xlu0 %161
  %163 = vrot.lane.b32.xlu0 %v36, 43
  %v164 = vpop.permute.xlu0 %163
  %vm167 = vcmask 1007448
  %168 = vst.msk [vmem:[#allocation2 + $0x8] sm:$0xff] %vm167, %v162
  %169 = vst.msk [vmem:[#allocation2 + $0x20] sm:$0xff] %vm167, %v164
  %170 = vrot.lane.b32.xlu0 %v34, 45
  %v171 = vpop.permute.xlu0 %170
  %172 = vrot.lane.b32.xlu0 %v36, 45
  %v173 = vpop.permute.xlu0 %172
  %vm176 = vcmask 1048552
  %177 = vst.msk [vmem:[#allocation2 + $0x8] sm:$0xff] %vm176, %v171
  %vm178 = vcmask 105472
  %179 = vst.msk [vmem:[#allocation2 + $0x10] sm:$0xff] %vm178, %v171
  %180 = vst.msk [vmem:[#allocation2 + $0x20] sm:$0xff] %vm176, %v173
  %181 = vst.msk [vmem:[#allocation2 + $0x28] sm:$0xff] %vm178, %v173
  %182 = vrot.lane.b32.xlu0 %v34, 47
  %v183 = vpop.permute.xlu0 %182
  %184 = vrot.lane.b32.xlu0 %v36, 47
  %v185 = vpop.permute.xlu0 %184
  %vm188 = vcmask 253048
  %189 = vst.msk [vmem:[#allocation2 + $0x10] sm:$0xff] %vm188, %v183
  %190 = vst.msk [vmem:[#allocation2 + $0x28] sm:$0xff] %vm188, %v185
  %191 = vrot.lane.b32.xlu0 %v34, 49
  %v192 = vpop.permute.xlu0 %191
  %193 = vrot.lane.b32.xlu0 %v36, 49
  %v194 = vpop.permute.xlu0 %193
  %vm197 = vcmask 400648
  %198 = vst.msk [vmem:[#allocation2 + $0x10] sm:$0xff] %vm197, %v192
  %199 = vst.msk [vmem:[#allocation2 + $0x28] sm:$0xff] %vm197, %v194
  %v200 = vld [vmem:[#allocation2] sm:$0xff]
  %v201 = vld [vmem:[#allocation2 + $0x8] sm:$0xff]
  %v202 = vld [vmem:[#allocation2 + $0x10] sm:$0xff]
  %v203 = vld [vmem:[#allocation2 + $0x18] sm:$0xff]
  %v204 = vld [vmem:[#allocation2 + $0x20] sm:$0xff]
  %v205 = vld [vmem:[#allocation2 + $0x28] sm:$0xff]
  %v206 = vld [vmem:[%s1] sm:$0xff]
  %210 = vrot.lane.b32.xlu0 %v200, 127
  %v211 = vpop.permute.xlu0 %210
  %212 = vrot.lane.b32.xlu0 %v201, 127
  %v213 = vpop.permute.xlu0 %212
  %214 = vrot.lane.b32.xlu0 %v202, 127
  %v215 = vpop.permute.xlu0 %214
  %vm216 = vcmask 1039360
  %v217 = vsel %vm216, %v211, %v213
  %v218 = vsel %vm216, %v213, %v215
  %222 = vrot.lane.b32.xlu0 %v200, 126
  %v223 = vpop.permute.xlu0 %222
  %224 = vrot.lane.b32.xlu0 %v201, 126
  %v225 = vpop.permute.xlu0 %224
  %226 = vrot.lane.b32.xlu0 %v202, 126
  %v227 = vpop.permute.xlu0 %226
  %vm228 = vcmask 1031168
  %v229 = vsel %vm228, %v223, %v225
  %v230 = vsel %vm228, %v225, %v227
  %234 = vrot.lane.b32.xlu0 %v200, 110
  %v235 = vpop.permute.xlu0 %234
  %236 = vrot.lane.b32.xlu0 %v201, 110
  %v237 = vpop.permute.xlu0 %236
  %238 = vrot.lane.b32.xlu0 %v202, 110
  %v239 = vpop.permute.xlu0 %238
  %vm240 = vcmask 900096
  %v241 = vsel %vm240, %v235, %v237
  %v242 = vsel %vm240, %v237, %v239
  %246 = vrot.lane.b32.xlu0 %v200, 109
  %v247 = vpop.permute.xlu0 %246
  %248 = vrot.lane.b32.xlu0 %v201, 109
  %v249 = vpop.permute.xlu0 %248
  %250 = vrot.lane.b32.xlu0 %v202, 109
  %v251 = vpop.permute.xlu0 %250
  %vm252 = vcmask 891904
  %v253 = vsel %vm252, %v247, %v249
  %v254 = vsel %vm252, %v249, %v251
  %258 = vrot.lane.b32.xlu0 %v200, 108
  %v259 = vpop.permute.xlu0 %258
  %260 = vrot.lane.b32.xlu0 %v201, 108
  %v261 = vpop.permute.xlu0 %260
  %262 = vrot.lane.b32.xlu0 %v202, 108
  %v263 = vpop.permute.xlu0 %262
  %vm264 = vcmask 883712
  %v265 = vsel %vm264, %v259, %v261
  %v266 = vsel %vm264, %v261, %v263
  %270 = vrot.lane.b32.xlu0 %v200, 92
  %v271 = vpop.permute.xlu0 %270
  %272 = vrot.lane.b32.xlu0 %v201, 92
  %v273 = vpop.permute.xlu0 %272
  %274 = vrot.lane.b32.xlu0 %v202, 92
  %v275 = vpop.permute.xlu0 %274
  %vm276 = vcmask 752640
  %v277 = vsel %vm276, %v271, %v273
  %v278 = vsel %vm276, %v273, %v275
  %282 = vrot.lane.b32.xlu0 %v200, 91
  %v283 = vpop.permute.xlu0 %282
  %284 = vrot.lane.b32.xlu0 %v201, 91
  %v285 = vpop.permute.xlu0 %284
  %286 = vrot.lane.b32.xlu0 %v202, 91
  %v287 = vpop.permute.xlu0 %286
  %vm288 = vcmask 744448
  %v289 = vsel %vm288, %v283, %v285
  %v290 = vsel %vm288, %v285, %v287
  %294 = vrot.lane.b32.xlu0 %v200, 90
  %v295 = vpop.permute.xlu0 %294
  %296 = vrot.lane.b32.xlu0 %v201, 90
  %v297 = vpop.permute.xlu0 %296
  %298 = vrot.lane.b32.xlu0 %v202, 90
  %v299 = vpop.permute.xlu0 %298
  %vm300 = vcmask 736256
  %v301 = vsel %vm300, %v295, %v297
  %v302 = vsel %vm300, %v297, %v299
  %vm306 = vcmask 588800
  %v308 = vsel %vm306, %v206, 0
  %310 = vmatprep.subr.mxu0 0.0
  %311 = vmatpush1.msra.mxu0 0.0
  %312 = vmatprep.subr.mxu0 0.0
  %313 = vmatpush1.msra.mxu0 0.0
  %314 = vmatprep.subr.mxu0 0.0
  %315 = vmatpush1.msra.mxu0 0.0
  %316 = vmatprep.subr.mxu0 0.0
  %317 = vmatpush1.msra.mxu0 0.0
  %318 = vmatprep.subr.mxu0 0.0
  %319 = vmatpush1.msra.mxu0 0.0
  %320 = vmatprep.subr.mxu0 0.0
  %321 = vmatpush1.msra.mxu0 0.0
  %322 = vmatprep.subr.mxu0 0.0
  %323 = vmatpush1.msra.mxu0 0.0
  %324 = vmatprep.subr.mxu0 %v302
  %325 = vmatpush1.msra.mxu0 %v301
  %326 = vmatprep.subr.mxu0 %v290
  %327 = vmatpush1.msra.mxu0 %v289
  %328 = vmatprep.subr.mxu0 %v278
  %329 = vmatpush1.msra.mxu0 %v277
  %330 = vmatprep.subr.mxu0 %v266
  %331 = vmatpush1.msra.mxu0 %v265
  %332 = vmatprep.subr.mxu0 %v254
  %333 = vmatpush1.msra.mxu0 %v253
  %334 = vmatprep.subr.mxu0 %v242
  %335 = vmatpush1.msra.mxu0 %v241
  %336 = vmatprep.subr.mxu0 %v230
  %337 = vmatpush1.msra.mxu0 %v229
  %338 = vmatprep.subr.mxu0 %v218
  %339 = vmatpush1.msra.mxu0 %v217
  %340 = vmatprep.subr.mxu0 %v201
  %341 = vmatpush1.msra.mxu0 %v200
  %342 = vmatprep.subr.mxu0 0.0
  %343 = vmatpush2.msra.mxu0 0.0
  %344 = vmatprep.subr.mxu0 0.0
  %345 = vmatpush2.msra.mxu0 0.0
  %346 = vmatprep.subr.mxu0 0.0
  %347 = vmatpush2.msra.mxu0 0.0
  %348 = vmatprep.subr.mxu0 0.0
  %349 = vmatpush2.msra.mxu0 0.0
  %350 = vmatprep.subr.mxu0 0.0
  %351 = vmatpush2.msra.mxu0 0.0
  %352 = vmatprep.subr.mxu0 0.0
  %353 = vmatpush2.msra.mxu0 0.0
  %354 = vmatprep.subr.mxu0 0.0
  %355 = vmatpush2.msra.mxu0 0.0
  %356 = vmatprep.subr.mxu0 0.0
  %357 = vmatpush2.msra.mxu0 0.0
  %358 = vmatprep.subr.mxu0 0.0
  %359 = vmatpush2.msra.mxu0 0.0
  %360 = vmatprep.subr.mxu0 0.0
  %361 = vmatpush2.msra.mxu0 0.0
  %362 = vmatprep.subr.mxu0 0.0
  %363 = vmatpush2.msra.mxu0 0.0
  %364 = vmatprep.subr.mxu0 0.0
  %365 = vmatpush2.msra.mxu0 0.0
  %366 = vmatprep.subr.mxu0 0.0
  %367 = vmatpush2.msra.mxu0 0.0
  %368 = vmatprep.subr.mxu0 0.0
  %369 = vmatpush2.msra.mxu0 0.0
  %370 = vmatprep.subr.mxu0 0.0
  %371 = vmatpush2.msra.mxu0 0.0
  %372 = vmatprep.subr.mxu0 0.0
  %373 = vmatpush2.msra.mxu0 0.0
  %374 = vmatprep.mubr.f32.mxu0 0.0
  %375 = vmatmul.mubr.f32.gmra.mxu0 %v308
  %v376 = vpop.f32.mrf.mxu0
  %v377 = vadd.f32 0.0, %v376
  %v378 = vpop.f32.mrf.mxu0
  %v379 = vadd.f32 0.0, %v378
  %380 = vdwg.mxu0
  %381 = vmatprep.subr.mxu0 0.0
  %382 = vmatpush1.msra.mxu0 0.0
  %383 = vmatprep.subr.mxu0 0.0
  %384 = vmatpush1.msra.mxu0 0.0
  %385 = vmatprep.subr.mxu0 0.0
  %386 = vmatpush1.msra.mxu0 0.0
  %387 = vmatprep.subr.mxu0 0.0
  %388 = vmatpush1.msra.mxu0 0.0
  %389 = vmatprep.subr.mxu0 0.0
  %390 = vmatpush1.msra.mxu0 0.0
  %391 = vmatprep.subr.mxu0 0.0
  %392 = vmatpush1.msra.mxu0 0.0
  %393 = vmatprep.subr.mxu0 0.0
  %394 = vmatpush1.msra.mxu0 0.0
  %395 = vmatprep.subr.mxu0 0.0
  %396 = vmatpush1.msra.mxu0 %v299
  %397 = vmatprep.subr.mxu0 0.0
  %398 = vmatpush1.msra.mxu0 %v287
  %399 = vmatprep.subr.mxu0 0.0
  %400 = vmatpush1.msra.mxu0 %v275
  %401 = vmatprep.subr.mxu0 0.0
  %402 = vmatpush1.msra.mxu0 %v263
  %403 = vmatprep.subr.mxu0 0.0
  %404 = vmatpush1.msra.mxu0 %v251
  %405 = vmatprep.subr.mxu0 0.0
  %406 = vmatpush1.msra.mxu0 %v239
  %407 = vmatprep.subr.mxu0 0.0
  %408 = vmatpush1.msra.mxu0 %v227
  %409 = vmatprep.subr.mxu0 0.0
  %410 = vmatpush1.msra.mxu0 %v215
  %411 = vmatprep.subr.mxu0 0.0
  %412 = vmatpush1.msra.mxu0 %v202
  %413 = vmatprep.subr.mxu0 0.0
  %414 = vmatpush2.msra.mxu0 0.0
  %415 = vmatprep.subr.mxu0 0.0
  %416 = vmatpush2.msra.mxu0 0.0
  %417 = vmatprep.subr.mxu0 0.0
  %418 = vmatpush2.msra.mxu0 0.0
  %419 = vmatprep.subr.mxu0 0.0
  %420 = vmatpush2.msra.mxu0 0.0
  %421 = vmatprep.subr.mxu0 0.0
  %422 = vmatpush2.msra.mxu0 0.0
  %423 = vmatprep.subr.mxu0 0.0
  %424 = vmatpush2.msra.mxu0 0.0
  %425 = vmatprep.subr.mxu0 0.0
  %426 = vmatpush2.msra.mxu0 0.0
  %427 = vmatprep.subr.mxu0 0.0
  %428 = vmatpush2.msra.mxu0 0.0
  %429 = vmatprep.subr.mxu0 0.0
  %430 = vmatpush2.msra.mxu0 0.0
  %431 = vmatprep.subr.mxu0 0.0
  %432 = vmatpush2.msra.mxu0 0.0
  %433 = vmatprep.subr.mxu0 0.0
  %434 = vmatpush2.msra.mxu0 0.0
  %435 = vmatprep.subr.mxu0 0.0
  %436 = vmatpush2.msra.mxu0 0.0
  %437 = vmatprep.subr.mxu0 0.0
  %438 = vmatpush2.msra.mxu0 0.0
  %439 = vmatprep.subr.mxu0 0.0
  %440 = vmatpush2.msra.mxu0 0.0
  %441 = vmatprep.subr.mxu0 0.0
  %442 = vmatpush2.msra.mxu0 0.0
  %443 = vmatprep.subr.mxu0 0.0
  %444 = vmatpush2.msra.mxu0 0.0
  %445 = vmatprep.mubr.f32.mxu0 0.0
  %446 = vmatmul.mubr.f32.gmra.mxu0 %v308
  %v447 = vpop.f32.mrf.mxu0
  %v448 = vadd.f32 0.0, %v447
  %v449 = vpop.f32.mrf.mxu0
  %450 = vdwg.mxu0
  %454 = vrot.lane.b32.xlu0 %v203, 127
  %v455 = vpop.permute.xlu0 %454
  %456 = vrot.lane.b32.xlu0 %v204, 127
  %v457 = vpop.permute.xlu0 %456
  %458 = vrot.lane.b32.xlu0 %v205, 127
  %v459 = vpop.permute.xlu0 %458
  %v460 = vsel %vm216, %v455, %v457
  %v461 = vsel %vm216, %v457, %v459
  %465 = vrot.lane.b32.xlu0 %v203, 126
  %v466 = vpop.permute.xlu0 %465
  %467 = vrot.lane.b32.xlu0 %v204, 126
  %v468 = vpop.permute.xlu0 %467
  %469 = vrot.lane.b32.xlu0 %v205, 126
  %v470 = vpop.permute.xlu0 %469
  %v471 = vsel %vm228, %v466, %v468
  %v472 = vsel %vm228, %v468, %v470
  %476 = vrot.lane.b32.xlu0 %v203, 110
  %v477 = vpop.permute.xlu0 %476
  %478 = vrot.lane.b32.xlu0 %v204, 110
  %v479 = vpop.permute.xlu0 %478
  %480 = vrot.lane.b32.xlu0 %v205, 110
  %v481 = vpop.permute.xlu0 %480
  %v482 = vsel %vm240, %v477, %v479
  %v483 = vsel %vm240, %v479, %v481
  %487 = vrot.lane.b32.xlu0 %v203, 109
  %v488 = vpop.permute.xlu0 %487
  %489 = vrot.lane.b32.xlu0 %v204, 109
  %v490 = vpop.permute.xlu0 %489
  %491 = vrot.lane.b32.xlu0 %v205, 109
  %v492 = vpop.permute.xlu0 %491
  %v493 = vsel %vm252, %v488, %v490
  %v494 = vsel %vm252, %v490, %v492
  %498 = vrot.lane.b32.xlu0 %v203, 108
  %v499 = vpop.permute.xlu0 %498
  %500 = vrot.lane.b32.xlu0 %v204, 108
  %v501 = vpop.permute.xlu0 %500
  %502 = vrot.lane.b32.xlu0 %v205, 108
  %v503 = vpop.permute.xlu0 %502
  %v504 = vsel %vm264, %v499, %v501
  %v505 = vsel %vm264, %v501, %v503
  %509 = vrot.lane.b32.xlu0 %v203, 92
  %v510 = vpop.permute.xlu0 %509
  %511 = vrot.lane.b32.xlu0 %v204, 92
  %v512 = vpop.permute.xlu0 %511
  %513 = vrot.lane.b32.xlu0 %v205, 92
  %v514 = vpop.permute.xlu0 %513
  %v515 = vsel %vm276, %v510, %v512
  %v516 = vsel %vm276, %v512, %v514
  %520 = vrot.lane.b32.xlu0 %v203, 91
  %v521 = vpop.permute.xlu0 %520
  %522 = vrot.lane.b32.xlu0 %v204, 91
  %v523 = vpop.permute.xlu0 %522
  %524 = vrot.lane.b32.xlu0 %v205, 91
  %v525 = vpop.permute.xlu0 %524
  %v526 = vsel %vm288, %v521, %v523
  %v527 = vsel %vm288, %v523, %v525
  %531 = vrot.lane.b32.xlu0 %v203, 90
  %v532 = vpop.permute.xlu0 %531
  %533 = vrot.lane.b32.xlu0 %v204, 90
  %v534 = vpop.permute.xlu0 %533
  %535 = vrot.lane.b32.xlu0 %v205, 90
  %v536 = vpop.permute.xlu0 %535
  %v537 = vsel %vm300, %v532, %v534
  %v538 = vsel %vm300, %v534, %v536
  %542 = vmatprep.subr.mxu0 0.0
  %543 = vmatpush1.msra.mxu0 0.0
  %544 = vmatprep.subr.mxu0 0.0
  %545 = vmatpush1.msra.mxu0 0.0
  %546 = vmatprep.subr.mxu0 0.0
  %547 = vmatpush1.msra.mxu0 0.0
  %548 = vmatprep.subr.mxu0 0.0
  %549 = vmatpush1.msra.mxu0 0.0
  %550 = vmatprep.subr.mxu0 0.0
  %551 = vmatpush1.msra.mxu0 0.0
  %552 = vmatprep.subr.mxu0 0.0
  %553 = vmatpush1.msra.mxu0 0.0
  %554 = vmatprep.subr.mxu0 0.0
  %555 = vmatpush1.msra.mxu0 0.0
  %556 = vmatprep.subr.mxu0 %v538
  %557 = vmatpush1.msra.mxu0 %v537
  %558 = vmatprep.subr.mxu0 %v527
  %559 = vmatpush1.msra.mxu0 %v526
  %560 = vmatprep.subr.mxu0 %v516
  %561 = vmatpush1.msra.mxu0 %v515
  %562 = vmatprep.subr.mxu0 %v505
  %563 = vmatpush1.msra.mxu0 %v504
  %564 = vmatprep.subr.mxu0 %v494
  %565 = vmatpush1.msra.mxu0 %v493
  %566 = vmatprep.subr.mxu0 %v483
  %567 = vmatpush1.msra.mxu0 %v482
  %568 = vmatprep.subr.mxu0 %v472
  %569 = vmatpush1.msra.mxu0 %v471
  %570 = vmatprep.subr.mxu0 %v461
  %571 = vmatpush1.msra.mxu0 %v460
  %572 = vmatprep.subr.mxu0 %v204
  %573 = vmatpush1.msra.mxu0 %v203
  %574 = vmatprep.subr.mxu0 0.0
  %575 = vmatpush2.msra.mxu0 0.0
  %576 = vmatprep.subr.mxu0 0.0
  %577 = vmatpush2.msra.mxu0 0.0
  %578 = vmatprep.subr.mxu0 0.0
  %579 = vmatpush2.msra.mxu0 0.0
  %580 = vmatprep.subr.mxu0 0.0
  %581 = vmatpush2.msra.mxu0 0.0
  %582 = vmatprep.subr.mxu0 0.0
  %583 = vmatpush2.msra.mxu0 0.0
  %584 = vmatprep.subr.mxu0 0.0
  %585 = vmatpush2.msra.mxu0 0.0
  %586 = vmatprep.subr.mxu0 0.0
  %587 = vmatpush2.msra.mxu0 0.0
  %588 = vmatprep.subr.mxu0 0.0
  %589 = vmatpush2.msra.mxu0 0.0
  %590 = vmatprep.subr.mxu0 0.0
  %591 = vmatpush2.msra.mxu0 0.0
  %592 = vmatprep.subr.mxu0 0.0
  %593 = vmatpush2.msra.mxu0 0.0
  %594 = vmatprep.subr.mxu0 0.0
  %595 = vmatpush2.msra.mxu0 0.0
  %596 = vmatprep.subr.mxu0 0.0
  %597 = vmatpush2.msra.mxu0 0.0
  %598 = vmatprep.subr.mxu0 0.0
  %599 = vmatpush2.msra.mxu0 0.0
  %600 = vmatprep.subr.mxu0 0.0
  %601 = vmatpush2.msra.mxu0 0.0
  %602 = vmatprep.subr.mxu0 0.0
  %603 = vmatpush2.msra.mxu0 0.0
  %604 = vmatprep.subr.mxu0 0.0
  %605 = vmatpush2.msra.mxu0 0.0
  %606 = vmatprep.mubr.f32.mxu0 0.0
  %607 = vmatmul.mubr.f32.gmra.mxu0 %v308
  %v608 = vpop.f32.mrf.mxu0
  %v609 = vadd.f32 0.0, %v608
  %v610 = vpop.f32.mrf.mxu0
  %v611 = vadd.f32 0.0, %v610
  %612 = vdwg.mxu0
  %613 = vmatprep.subr.mxu0 0.0
  %614 = vmatpush1.msra.mxu0 0.0
  %615 = vmatprep.subr.mxu0 0.0
  %616 = vmatpush1.msra.mxu0 0.0
  %617 = vmatprep.subr.mxu0 0.0
  %618 = vmatpush1.msra.mxu0 0.0
  %619 = vmatprep.subr.mxu0 0.0
  %620 = vmatpush1.msra.mxu0 0.0
  %621 = vmatprep.subr.mxu0 0.0
  %622 = vmatpush1.msra.mxu0 0.0
  %623 = vmatprep.subr.mxu0 0.0
  %624 = vmatpush1.msra.mxu0 0.0
  %625 = vmatprep.subr.mxu0 0.0
  %626 = vmatpush1.msra.mxu0 0.0
  %627 = vmatprep.subr.mxu0 0.0
  %628 = vmatpush1.msra.mxu0 %v536
  %629 = vmatprep.subr.mxu0 0.0
  %630 = vmatpush1.msra.mxu0 %v525
  %631 = vmatprep.subr.mxu0 0.0
  %632 = vmatpush1.msra.mxu0 %v514
  %633 = vmatprep.subr.mxu0 0.0
  %634 = vmatpush1.msra.mxu0 %v503
  %635 = vmatprep.subr.mxu0 0.0
  %636 = vmatpush1.msra.mxu0 %v492
  %637 = vmatprep.subr.mxu0 0.0
  %638 = vmatpush1.msra.mxu0 %v481
  %639 = vmatprep.subr.mxu0 0.0
  %640 = vmatpush1.msra.mxu0 %v470
  %641 = vmatprep.subr.mxu0 0.0
  %642 = vmatpush1.msra.mxu0 %v459
  %643 = vmatprep.subr.mxu0 0.0
  %644 = vmatpush1.msra.mxu0 %v205
  %645 = vmatprep.subr.mxu0 0.0
  %646 = vmatpush2.msra.mxu0 0.0
  %647 = vmatprep.subr.mxu0 0.0
  %648 = vmatpush2.msra.mxu0 0.0
  %649 = vmatprep.subr.mxu0 0.0
  %650 = vmatpush2.msra.mxu0 0.0
  %651 = vmatprep.subr.mxu0 0.0
  %652 = vmatpush2.msra.mxu0 0.0
  %653 = vmatprep.subr.mxu0 0.0
  %654 = vmatpush2.msra.mxu0 0.0
  %655 = vmatprep.subr.mxu0 0.0
  %656 = vmatpush2.msra.mxu0 0.0
  %657 = vmatprep.subr.mxu0 0.0
  %658 = vmatpush2.msra.mxu0 0.0
  %659 = vmatprep.subr.mxu0 0.0
  %660 = vmatpush2.msra.mxu0 0.0
  %661 = vmatprep.subr.mxu0 0.0
  %662 = vmatpush2.msra.mxu0 0.0
  %663 = vmatprep.subr.mxu0 0.0
  %664 = vmatpush2.msra.mxu0 0.0
  %665 = vmatprep.subr.mxu0 0.0
  %666 = vmatpush2.msra.mxu0 0.0
  %667 = vmatprep.subr.mxu0 0.0
  %668 = vmatpush2.msra.mxu0 0.0
  %669 = vmatprep.subr.mxu0 0.0
  %670 = vmatpush2.msra.mxu0 0.0
  %671 = vmatprep.subr.mxu0 0.0
  %672 = vmatpush2.msra.mxu0 0.0
  %673 = vmatprep.subr.mxu0 0.0
  %674 = vmatpush2.msra.mxu0 0.0
  %675 = vmatprep.subr.mxu0 0.0
  %676 = vmatpush2.msra.mxu0 0.0
  %677 = vmatprep.mubr.f32.mxu0 0.0
  %678 = vmatmul.mubr.f32.gmra.mxu0 %v308
  %v679 = vpop.f32.mrf.mxu0
  %v680 = vadd.f32 0.0, %v679
  %v681 = vpop.f32.mrf.mxu0
  %682 = vdwg.mxu0
  %v684 = vlaneseq
  %v685 = vshrl.u32 %v684, 7
  %v686 = vsub.s32 0, %v685
  %v687 = vrot.slane %v37, %v686
  %v688 = vlaneseq
  %v689 = vshrl.u32 %v688, 7
  %v690 = vsub.s32 1, %v689
  %v691 = vrot.slane %v37, %v690
  %v692 = vlaneseq
  %v693 = vshrl.u32 %v692, 7
  %v694 = vsub.s32 2, %v693
  %v695 = vrot.slane %v37, %v694
  %v699 = vmul.f32 %v377, %v687
  %v700 = vmul.f32 %v379, %v691
  %v701 = vmul.f32 %v448, %v695
  %v702 = vmul.f32 %v609, %v687
  %v703 = vmul.f32 %v611, %v691
  %v704 = vmul.f32 %v680, %v695
  %v705 = vadd.f32 %v699, %v700
  %vm706 = vcmask 261120
  %v707 = vsel %vm706, %v701, 0.0
  %v708 = vadd.f32 %v705, %v707
  %709 = vadd.xlane.f32.xlu0 %v708
  %v710 = vpop.xlane.xlu0 %709
  %v711 = vadd.f32 %v702, %v703
  %v712 = vsel %vm706, %v704, 0.0
  %v713 = vadd.f32 %v711, %v712
  %714 = vadd.xlane.f32.xlu0 %v713
  %v715 = vpop.xlane.xlu0 %714
  %v716 = vmul.f32 %v699, %v699
  %v717 = vmul.f32 %v700, %v700
  %v718 = vmul.f32 %v701, %v701
  %v719 = vmul.f32 %v702, %v702
  %v720 = vmul.f32 %v703, %v703
  %v721 = vmul.f32 %v704, %v704
  %v722 = vadd.f32 %v716, %v717
  %v723 = vsel %vm706, %v718, 0.0
  %v724 = vadd.f32 %v722, %v723
  %725 = vadd.xlane.f32.xlu0 %v724
  %v726 = vpop.xlane.xlu0 %725
  %v727 = vadd.f32 %v719, %v720
  %v728 = vsel %vm706, %v721, 0.0
  %v729 = vadd.f32 %v727, %v728
  %730 = vadd.xlane.f32.xlu0 %v729
  %v731 = vpop.xlane.xlu0 %730
  %v732 = vadd.f32 %v710, %v715
  %v733 = vadd.f32 %v726, %v731
  %v734 = vmul.f32 %v732, 0.001953125
  %v735 = vmul.f32 %v733, 0.001953125
  %v736 = vmul.f32 %v734, %v734
  %v737 = vsub.f32 %v735, %v736
  %v738 = vld [vmem:[%s3] sm:$0xff]
  %v739 = vadd.f32 %v737, 1e-05
  %v740 = vrsqrt.pop %v739
  %v741 = vmul.f32 %v738, %v740
  %v742 = vld [vmem:[%s4] sm:$0xff]
  %v743 = vmul.f32 %v734, %v741
  %v744 = vsub.f32 %v742, %v743
  %746 = vset.pattern.permute.xlu0 0
  %747 = vperm.xlu0 %746, %v741
  %v748 = vpop.permute.xlu0 %747
  %v750 = vmul.f32 %v377, %v748
  %v751 = vmul.f32 %v379, %v748
  %v752 = vmul.f32 %v448, %v748
  %v753 = vmul.f32 %v609, %v748
  %v754 = vmul.f32 %v611, %v748
  %v755 = vmul.f32 %v680, %v748
  %757 = vset.pattern.permute.xlu0 0
  %758 = vperm.xlu0 %757, %v744
  %v759 = vpop.permute.xlu0 %758
  %v761 = vadd.f32 %v750, %v759
  %v762 = vadd.f32 %v751, %v759
  %v763 = vadd.f32 %v752, %v759
  %v764 = vadd.f32 %v753, %v759
  %v765 = vadd.f32 %v754, %v759
  %v766 = vadd.f32 %v755, %v759
  %vm767 = vcmp.ge.f32.partialorder %v761, 0.0
  %vm768 = vcmp.ge.f32.partialorder %v762, 0.0
  %vm769 = vcmp.ge.f32.partialorder %v763, 0.0
  %vm770 = vcmp.ge.f32.partialorder %v764, 0.0
  %vm771 = vcmp.ge.f32.partialorder %v765, 0.0
  %vm772 = vcmp.ge.f32.partialorder %v766, 0.0
  %v773 = vstv %s38
  %v774 = vmul.f32 %v773, %v761
  %v775 = vmul.f32 %v773, %v762
  %v776 = vmul.f32 %v773, %v763
  %v777 = vmul.f32 %v773, %v764
  %v778 = vmul.f32 %v773, %v765
  %v779 = vmul.f32 %v773, %v766
  %v780 = vsel %vm767, %v761, %v774
  %v781 = vsel %vm768, %v762, %v775
  %v782 = vsel %vm769, %v763, %v776
  %v783 = vsel %vm770, %v764, %v777
  %v784 = vsel %vm771, %v765, %v778
  %v785 = vsel %vm772, %v766, %v779
  %786 = vst [vmem:[#allocation2] sm:$0xff] 0.0
  %787 = vst [vmem:[#allocation2 + $0x8] sm:$0xff] 0.0
  %788 = vst.msk [vmem:[#allocation2 + $0x10] sm:$0xff] %vm41, 0.0
  %789 = vst [vmem:[#allocation2 + $0x18] sm:$0xff] 0.0
  %790 = vst [vmem:[#allocation2 + $0x20] sm:$0xff] 0.0
  %791 = vst.msk [vmem:[#allocation2 + $0x28] sm:$0xff] %vm41, 0.0
  %v792 = vmul.f32 %v780, %v687
  %v793 = vmul.f32 %v781, %v691
  %v794 = vmul.f32 %v782, %v695
  %v795 = vmul.f32 %v783, %v687
  %v796 = vmul.f32 %v784, %v691
  %v797 = vmul.f32 %v785, %v695
  %804 = vrot.lane.b32.xlu0 %v792, 19
  %v805 = vpop.permute.xlu0 %804
  %806 = vrot.lane.b32.xlu0 %v793, 19
  %v807 = vpop.permute.xlu0 %806
  %808 = vrot.lane.b32.xlu0 %v794, 19
  %v809 = vpop.permute.xlu0 %808
  %810 = vrot.lane.b32.xlu0 %v795, 19
  %v811 = vpop.permute.xlu0 %810
  %812 = vrot.lane.b32.xlu0 %v796, 19
  %v813 = vpop.permute.xlu0 %812
  %814 = vrot.lane.b32.xlu0 %v797, 19
  %v815 = vpop.permute.xlu0 %814
  %vm816 = vcmask 154624
  %v817 = vsel %vm816, %v805, %v807
  %v818 = vsel %vm816, %v807, %v809
  %v819 = vsel %vm816, %v811, %v813
  %v820 = vsel %vm816, %v813, %v815
  %vm827 = vcmask 1047704
  %828 = vst.msk [vmem:[#allocation2] sm:$0xff] %vm827, %v805
  %829 = vst [vmem:[#allocation2 + $0x8] sm:$0xff] %v817
  %vm830 = vcmask 416768
  %831 = vst.msk [vmem:[#allocation2 + $0x10] sm:$0xff] %vm830, %v818
  %832 = vst.msk [vmem:[#allocation2 + $0x18] sm:$0xff] %vm827, %v811
  %833 = vst [vmem:[#allocation2 + $0x20] sm:$0xff] %v819
  %834 = vst.msk [vmem:[#allocation2 + $0x28] sm:$0xff] %vm830, %v820
  %v835 = vld [vmem:[#allocation2] sm:$0xff]
  %v836 = vld [vmem:[#allocation2 + $0x8] sm:$0xff]
  %v837 = vld [vmem:[#allocation2 + $0x10] sm:$0xff]
  %v838 = vld [vmem:[#allocation2 + $0x18] sm:$0xff]
  %v839 = vld [vmem:[#allocation2 + $0x20] sm:$0xff]
  %v840 = vld [vmem:[#allocation2 + $0x28] sm:$0xff]
  %v841 = vld [vmem:[%s2] sm:$0xff]
  %845 = vrot.lane.b32.xlu0 %v835, 127
  %v846 = vpop.permute.xlu0 %845
  %847 = vrot.lane.b32.xlu0 %v836, 127
  %v848 = vpop.permute.xlu0 %847
  %849 = vrot.lane.b32.xlu0 %v837, 127
  %v850 = vpop.permute.xlu0 %849
  %v851 = vsel %vm216, %v846, %v848
  %v852 = vsel %vm216, %v848, %v850
  %856 = vrot.lane.b32.xlu0 %v835, 126
  %v857 = vpop.permute.xlu0 %856
  %858 = vrot.lane.b32.xlu0 %v836, 126
  %v859 = vpop.permute.xlu0 %858
  %860 = vrot.lane.b32.xlu0 %v837, 126
  %v861 = vpop.permute.xlu0 %860
  %v862 = vsel %vm228, %v857, %v859
  %v863 = vsel %vm228, %v859, %v861
  %867 = vrot.lane.b32.xlu0 %v835, 110
  %v868 = vpop.permute.xlu0 %867
  %869 = vrot.lane.b32.xlu0 %v836, 110
  %v870 = vpop.permute.xlu0 %869
  %871 = vrot.lane.b32.xlu0 %v837, 110
  %v872 = vpop.permute.xlu0 %871
  %v873 = vsel %vm240, %v868, %v870
  %v874 = vsel %vm240, %v870, %v872
  %878 = vrot.lane.b32.xlu0 %v835, 109
  %v879 = vpop.permute.xlu0 %878
  %880 = vrot.lane.b32.xlu0 %v836, 109
  %v881 = vpop.permute.xlu0 %880
  %882 = vrot.lane.b32.xlu0 %v837, 109
  %v883 = vpop.permute.xlu0 %882
  %v884 = vsel %vm252, %v879, %v881
  %v885 = vsel %vm252, %v881, %v883
  %889 = vrot.lane.b32.xlu0 %v835, 108
  %v890 = vpop.permute.xlu0 %889
  %891 = vrot.lane.b32.xlu0 %v836, 108
  %v892 = vpop.permute.xlu0 %891
  %893 = vrot.lane.b32.xlu0 %v837, 108
  %v894 = vpop.permute.xlu0 %893
  %v895 = vsel %vm264, %v890, %v892
  %v896 = vsel %vm264, %v892, %v894
  %900 = vrot.lane.b32.xlu0 %v835, 92
  %v901 = vpop.permute.xlu0 %900
  %902 = vrot.lane.b32.xlu0 %v836, 92
  %v903 = vpop.permute.xlu0 %902
  %904 = vrot.lane.b32.xlu0 %v837, 92
  %v905 = vpop.permute.xlu0 %904
  %v906 = vsel %vm276, %v901, %v903
  %v907 = vsel %vm276, %v903, %v905
  %911 = vrot.lane.b32.xlu0 %v835, 91
  %v912 = vpop.permute.xlu0 %911
  %913 = vrot.lane.b32.xlu0 %v836, 91
  %v914 = vpop.permute.xlu0 %913
  %915 = vrot.lane.b32.xlu0 %v837, 91
  %v916 = vpop.permute.xlu0 %915
  %v917 = vsel %vm288, %v912, %v914
  %v918 = vsel %vm288, %v914, %v916
  %922 = vrot.lane.b32.xlu0 %v835, 90
  %v923 = vpop.permute.xlu0 %922
  %924 = vrot.lane.b32.xlu0 %v836, 90
  %v925 = vpop.permute.xlu0 %924
  %926 = vrot.lane.b32.xlu0 %v837, 90
  %v927 = vpop.permute.xlu0 %926
  %v928 = vsel %vm300, %v923, %v925
  %v929 = vsel %vm300, %v925, %v927
  %v934 = vsel %vm306, %v841, 0
  %936 = vmatprep.subr.mxu0 0.0
  %937 = vmatpush1.msra.mxu0 0.0
  %938 = vmatprep.subr.mxu0 0.0
  %939 = vmatpush1.msra.mxu0 0.0
  %940 = vmatprep.subr.mxu0 0.0
  %941 = vmatpush1.msra.mxu0 0.0
  %942 = vmatprep.subr.mxu0 0.0
  %943 = vmatpush1.msra.mxu0 0.0
  %944 = vmatprep.subr.mxu0 0.0
  %945 = vmatpush1.msra.mxu0 0.0
  %946 = vmatprep.subr.mxu0 0.0
  %947 = vmatpush1.msra.mxu0 0.0
  %948 = vmatprep.subr.mxu0 0.0
  %949 = vmatpush1.msra.mxu0 0.0
  %950 = vmatprep.subr.mxu0 %v929
  %951 = vmatpush1.msra.mxu0 %v928
  %952 = vmatprep.subr.mxu0 %v918
  %953 = vmatpush1.msra.mxu0 %v917
  %954 = vmatprep.subr.mxu0 %v907
  %955 = vmatpush1.msra.mxu0 %v906
  %956 = vmatprep.subr.mxu0 %v896
  %957 = vmatpush1.msra.mxu0 %v895
  %958 = vmatprep.subr.mxu0 %v885
  %959 = vmatpush1.msra.mxu0 %v884
  %960 = vmatprep.subr.mxu0 %v874
  %961 = vmatpush1.msra.mxu0 %v873
  %962 = vmatprep.subr.mxu0 %v863
  %963 = vmatpush1.msra.mxu0 %v862
  %964 = vmatprep.subr.mxu0 %v852
  %965 = vmatpush1.msra.mxu0 %v851
  %966 = vmatprep.subr.mxu0 %v836
  %967 = vmatpush1.msra.mxu0 %v835
  %968 = vmatprep.subr.mxu0 0.0
  %969 = vmatpush2.msra.mxu0 0.0
  %970 = vmatprep.subr.mxu0 0.0
  %971 = vmatpush2.msra.mxu0 0.0
  %972 = vmatprep.subr.mxu0 0.0
  %973 = vmatpush2.msra.mxu0 0.0
  %974 = vmatprep.subr.mxu0 0.0
  %975 = vmatpush2.msra.mxu0 0.0
  %976 = vmatprep.subr.mxu0 0.0
  %977 = vmatpush2.msra.mxu0 0.0
  %978 = vmatprep.subr.mxu0 0.0
  %979 = vmatpush2.msra.mxu0 0.0
  %980 = vmatprep.subr.mxu0 0.0
  %981 = vmatpush2.msra.mxu0 0.0
  %982 = vmatprep.subr.mxu0 0.0
  %983 = vmatpush2.msra.mxu0 0.0
  %984 = vmatprep.subr.mxu0 0.0
  %985 = vmatpush2.msra.mxu0 0.0
  %986 = vmatprep.subr.mxu0 0.0
  %987 = vmatpush2.msra.mxu0 0.0
  %988 = vmatprep.subr.mxu0 0.0
  %989 = vmatpush2.msra.mxu0 0.0
  %990 = vmatprep.subr.mxu0 0.0
  %991 = vmatpush2.msra.mxu0 0.0
  %992 = vmatprep.subr.mxu0 0.0
  %993 = vmatpush2.msra.mxu0 0.0
  %994 = vmatprep.subr.mxu0 0.0
  %995 = vmatpush2.msra.mxu0 0.0
  %996 = vmatprep.subr.mxu0 0.0
  %997 = vmatpush2.msra.mxu0 0.0
  %998 = vmatprep.subr.mxu0 0.0
  %999 = vmatpush2.msra.mxu0 0.0
  %1000 = vmatprep.mubr.f32.mxu0 0.0
  %1001 = vmatmul.mubr.f32.gmra.mxu0 %v934
  %v1002 = vpop.f32.mrf.mxu0
  %v1003 = vadd.f32 0.0, %v1002
  %v1004 = vpop.f32.mrf.mxu0
  %v1005 = vadd.f32 0.0, %v1004
  %1006 = vdwg.mxu0
  %1007 = vmatprep.subr.mxu0 0.0
  %1008 = vmatpush1.msra.mxu0 0.0
  %1009 = vmatprep.subr.mxu0 0.0
  %1010 = vmatpush1.msra.mxu0 0.0
  %1011 = vmatprep.subr.mxu0 0.0
  %1012 = vmatpush1.msra.mxu0 0.0
  %1013 = vmatprep.subr.mxu0 0.0
  %1014 = vmatpush1.msra.mxu0 0.0
  %1015 = vmatprep.subr.mxu0 0.0
  %1016 = vmatpush1.msra.mxu0 0.0
  %1017 = vmatprep.subr.mxu0 0.0
  %1018 = vmatpush1.msra.mxu0 0.0
  %1019 = vmatprep.subr.mxu0 0.0
  %1020 = vmatpush1.msra.mxu0 0.0
  %1021 = vmatprep.subr.mxu0 0.0
  %1022 = vmatpush1.msra.mxu0 %v927
  %1023 = vmatprep.subr.mxu0 0.0
  %1024 = vmatpush1.msra.mxu0 %v916
  %1025 = vmatprep.subr.mxu0 0.0
  %1026 = vmatpush1.msra.mxu0 %v905
  %1027 = vmatprep.subr.mxu0 0.0
  %1028 = vmatpush1.msra.mxu0 %v894
  %1029 = vmatprep.subr.mxu0 0.0
  %1030 = vmatpush1.msra.mxu0 %v883
  %1031 = vmatprep.subr.mxu0 0.0
  %1032 = vmatpush1.msra.mxu0 %v872
  %1033 = vmatprep.subr.mxu0 0.0
  %1034 = vmatpush1.msra.mxu0 %v861
  %1035 = vmatprep.subr.mxu0 0.0
  %1036 = vmatpush1.msra.mxu0 %v850
  %1037 = vmatprep.subr.mxu0 0.0
  %1038 = vmatpush1.msra.mxu0 %v837
  %1039 = vmatprep.subr.mxu0 0.0
  %1040 = vmatpush2.msra.mxu0 0.0
  %1041 = vmatprep.subr.mxu0 0.0
  %1042 = vmatpush2.msra.mxu0 0.0
  %1043 = vmatprep.subr.mxu0 0.0
  %1044 = vmatpush2.msra.mxu0 0.0
  %1045 = vmatprep.subr.mxu0 0.0
  %1046 = vmatpush2.msra.mxu0 0.0
  %1047 = vmatprep.subr.mxu0 0.0
  %1048 = vmatpush2.msra.mxu0 0.0
  %1049 = vmatprep.subr.mxu0 0.0
  %1050 = vmatpush2.msra.mxu0 0.0
  %1051 = vmatprep.subr.mxu0 0.0
  %1052 = vmatpush2.msra.mxu0 0.0
  %1053 = vmatprep.subr.mxu0 0.0
  %1054 = vmatpush2.msra.mxu0 0.0
  %1055 = vmatprep.subr.mxu0 0.0
  %1056 = vmatpush2.msra.mxu0 0.0
  %1057 = vmatprep.subr.mxu0 0.0
  %1058 = vmatpush2.msra.mxu0 0.0
  %1059 = vmatprep.subr.mxu0 0.0
  %1060 = vmatpush2.msra.mxu0 0.0
  %1061 = vmatprep.subr.mxu0 0.0
  %1062 = vmatpush2.msra.mxu0 0.0
  %1063 = vmatprep.subr.mxu0 0.0
  %1064 = vmatpush2.msra.mxu0 0.0
  %1065 = vmatprep.subr.mxu0 0.0
  %1066 = vmatpush2.msra.mxu0 0.0
  %1067 = vmatprep.subr.mxu0 0.0
  %1068 = vmatpush2.msra.mxu0 0.0
  %1069 = vmatprep.subr.mxu0 0.0
  %1070 = vmatpush2.msra.mxu0 0.0
  %1071 = vmatprep.mubr.f32.mxu0 0.0
  %1072 = vmatmul.mubr.f32.gmra.mxu0 %v934
  %v1073 = vpop.f32.mrf.mxu0
  %v1074 = vadd.f32 0.0, %v1073
  %v1075 = vpop.f32.mrf.mxu0
  %1076 = vdwg.mxu0
  %1080 = vrot.lane.b32.xlu0 %v838, 127
  %v1081 = vpop.permute.xlu0 %1080
  %1082 = vrot.lane.b32.xlu0 %v839, 127
  %v1083 = vpop.permute.xlu0 %1082
  %1084 = vrot.lane.b32.xlu0 %v840, 127
  %v1085 = vpop.permute.xlu0 %1084
  %v1086 = vsel %vm216, %v1081, %v1083
  %v1087 = vsel %vm216, %v1083, %v1085
  %1091 = vrot.lane.b32.xlu0 %v838, 126
  %v1092 = vpop.permute.xlu0 %1091
  %1093 = vrot.lane.b32.xlu0 %v839, 126
  %v1094 = vpop.permute.xlu0 %1093
  %1095 = vrot.lane.b32.xlu0 %v840, 126
  %v1096 = vpop.permute.xlu0 %1095
  %v1097 = vsel %vm228, %v1092, %v1094
  %v1098 = vsel %vm228, %v1094, %v1096
  %1102 = vrot.lane.b32.xlu0 %v838, 110
  %v1103 = vpop.permute.xlu0 %1102
  %1104 = vrot.lane.b32.xlu0 %v839, 110
  %v1105 = vpop.permute.xlu0 %1104
  %1106 = vrot.lane.b32.xlu0 %v840, 110
  %v1107 = vpop.permute.xlu0 %1106
  %v1108 = vsel %vm240, %v1103, %v1105
  %v1109 = vsel %vm240, %v1105, %v1107
  %1113 = vrot.lane.b32.xlu0 %v838, 109
  %v1114 = vpop.permute.xlu0 %1113
  %1115 = vrot.lane.b32.xlu0 %v839, 109
  %v1116 = vpop.permute.xlu0 %1115
  %1117 = vrot.lane.b32.xlu0 %v840, 109
  %v1118 = vpop.permute.xlu0 %1117
  %v1119 = vsel %vm252, %v1114, %v1116
  %v1120 = vsel %vm252, %v1116, %v1118
  %1124 = vrot.lane.b32.xlu0 %v838, 108
  %v1125 = vpop.permute.xlu0 %1124
  %1126 = vrot.lane.b32.xlu0 %v839, 108
  %v1127 = vpop.permute.xlu0 %1126
  %1128 = vrot.lane.b32.xlu0 %v840, 108
  %v1129 = vpop.permute.xlu0 %1128
  %v1130 = vsel %vm264, %v1125, %v1127
  %v1131 = vsel %vm264, %v1127, %v1129
  %1135 = vrot.lane.b32.xlu0 %v838, 92
  %v1136 = vpop.permute.xlu0 %1135
  %1137 = vrot.lane.b32.xlu0 %v839, 92
  %v1138 = vpop.permute.xlu0 %1137
  %1139 = vrot.lane.b32.xlu0 %v840, 92
  %v1140 = vpop.permute.xlu0 %1139
  %v1141 = vsel %vm276, %v1136, %v1138
  %v1142 = vsel %vm276, %v1138, %v1140
  %1146 = vrot.lane.b32.xlu0 %v838, 91
  %v1147 = vpop.permute.xlu0 %1146
  %1148 = vrot.lane.b32.xlu0 %v839, 91
  %v1149 = vpop.permute.xlu0 %1148
  %1150 = vrot.lane.b32.xlu0 %v840, 91
  %v1151 = vpop.permute.xlu0 %1150
  %v1152 = vsel %vm288, %v1147, %v1149
  %v1153 = vsel %vm288, %v1149, %v1151
  %1157 = vrot.lane.b32.xlu0 %v838, 90
  %v1158 = vpop.permute.xlu0 %1157
  %1159 = vrot.lane.b32.xlu0 %v839, 90
  %v1160 = vpop.permute.xlu0 %1159
  %1161 = vrot.lane.b32.xlu0 %v840, 90
  %v1162 = vpop.permute.xlu0 %1161
  %v1163 = vsel %vm300, %v1158, %v1160
  %v1164 = vsel %vm300, %v1160, %v1162
  %1168 = vmatprep.subr.mxu0 0.0
  %1169 = vmatpush1.msra.mxu0 0.0
  %1170 = vmatprep.subr.mxu0 0.0
  %1171 = vmatpush1.msra.mxu0 0.0
  %1172 = vmatprep.subr.mxu0 0.0
  %1173 = vmatpush1.msra.mxu0 0.0
  %1174 = vmatprep.subr.mxu0 0.0
  %1175 = vmatpush1.msra.mxu0 0.0
  %1176 = vmatprep.subr.mxu0 0.0
  %1177 = vmatpush1.msra.mxu0 0.0
  %1178 = vmatprep.subr.mxu0 0.0
  %1179 = vmatpush1.msra.mxu0 0.0
  %1180 = vmatprep.subr.mxu0 0.0
  %1181 = vmatpush1.msra.mxu0 0.0
  %1182 = vmatprep.subr.mxu0 %v1164
  %1183 = vmatpush1.msra.mxu0 %v1163
  %1184 = vmatprep.subr.mxu0 %v1153
  %1185 = vmatpush1.msra.mxu0 %v1152
  %1186 = vmatprep.subr.mxu0 %v1142
  %1187 = vmatpush1.msra.mxu0 %v1141
  %1188 = vmatprep.subr.mxu0 %v1131
  %1189 = vmatpush1.msra.mxu0 %v1130
  %1190 = vmatprep.subr.mxu0 %v1120
  %1191 = vmatpush1.msra.mxu0 %v1119
  %1192 = vmatprep.subr.mxu0 %v1109
  %1193 = vmatpush1.msra.mxu0 %v1108
  %1194 = vmatprep.subr.mxu0 %v1098
  %1195 = vmatpush1.msra.mxu0 %v1097
  %1196 = vmatprep.subr.mxu0 %v1087
  %1197 = vmatpush1.msra.mxu0 %v1086
  %1198 = vmatprep.subr.mxu0 %v839
  %1199 = vmatpush1.msra.mxu0 %v838
  %1200 = vmatprep.subr.mxu0 0.0
  %1201 = vmatpush2.msra.mxu0 0.0
  %1202 = vmatprep.subr.mxu0 0.0
  %1203 = vmatpush2.msra.mxu0 0.0
  %1204 = vmatprep.subr.mxu0 0.0
  %1205 = vmatpush2.msra.mxu0 0.0
  %1206 = vmatprep.subr.mxu0 0.0
  %1207 = vmatpush2.msra.mxu0 0.0
  %1208 = vmatprep.subr.mxu0 0.0
  %1209 = vmatpush2.msra.mxu0 0.0
  %1210 = vmatprep.subr.mxu0 0.0
  %1211 = vmatpush2.msra.mxu0 0.0
  %1212 = vmatprep.subr.mxu0 0.0
  %1213 = vmatpush2.msra.mxu0 0.0
  %1214 = vmatprep.subr.mxu0 0.0
  %1215 = vmatpush2.msra.mxu0 0.0
  %1216 = vmatprep.subr.mxu0 0.0
  %1217 = vmatpush2.msra.mxu0 0.0
  %1218 = vmatprep.subr.mxu0 0.0
  %1219 = vmatpush2.msra.mxu0 0.0
  %1220 = vmatprep.subr.mxu0 0.0
  %1221 = vmatpush2.msra.mxu0 0.0
  %1222 = vmatprep.subr.mxu0 0.0
  %1223 = vmatpush2.msra.mxu0 0.0
  %1224 = vmatprep.subr.mxu0 0.0
  %1225 = vmatpush2.msra.mxu0 0.0
  %1226 = vmatprep.subr.mxu0 0.0
  %1227 = vmatpush2.msra.mxu0 0.0
  %1228 = vmatprep.subr.mxu0 0.0
  %1229 = vmatpush2.msra.mxu0 0.0
  %1230 = vmatprep.subr.mxu0 0.0
  %1231 = vmatpush2.msra.mxu0 0.0
  %1232 = vmatprep.mubr.f32.mxu0 0.0
  %1233 = vmatmul.mubr.f32.gmra.mxu0 %v934
  %v1234 = vpop.f32.mrf.mxu0
  %v1235 = vadd.f32 0.0, %v1234
  %v1236 = vpop.f32.mrf.mxu0
  %v1237 = vadd.f32 0.0, %v1236
  %1238 = vdwg.mxu0
  %1239 = vmatprep.subr.mxu0 0.0
  %1240 = vmatpush1.msra.mxu0 0.0
  %1241 = vmatprep.subr.mxu0 0.0
  %1242 = vmatpush1.msra.mxu0 0.0
  %1243 = vmatprep.subr.mxu0 0.0
  %1244 = vmatpush1.msra.mxu0 0.0
  %1245 = vmatprep.subr.mxu0 0.0
  %1246 = vmatpush1.msra.mxu0 0.0
  %1247 = vmatprep.subr.mxu0 0.0
  %1248 = vmatpush1.msra.mxu0 0.0
  %1249 = vmatprep.subr.mxu0 0.0
  %1250 = vmatpush1.msra.mxu0 0.0
  %1251 = vmatprep.subr.mxu0 0.0
  %1252 = vmatpush1.msra.mxu0 0.0
  %1253 = vmatprep.subr.mxu0 0.0
  %1254 = vmatpush1.msra.mxu0 %v1162
  %1255 = vmatprep.subr.mxu0 0.0
  %1256 = vmatpush1.msra.mxu0 %v1151
  %1257 = vmatprep.subr.mxu0 0.0
  %1258 = vmatpush1.msra.mxu0 %v1140
  %1259 = vmatprep.subr.mxu0 0.0
  %1260 = vmatpush1.msra.mxu0 %v1129
  %1261 = vmatprep.subr.mxu0 0.0
  %1262 = vmatpush1.msra.mxu0 %v1118
  %1263 = vmatprep.subr.mxu0 0.0
  %1264 = vmatpush1.msra.mxu0 %v1107
  %1265 = vmatprep.subr.mxu0 0.0
  %1266 = vmatpush1.msra.mxu0 %v1096
  %1267 = vmatprep.subr.mxu0 0.0
  %1268 = vmatpush1.msra.mxu0 %v1085
  %1269 = vmatprep.subr.mxu0 0.0
  %1270 = vmatpush1.msra.mxu0 %v840
  %1271 = vmatprep.subr.mxu0 0.0
  %1272 = vmatpush2.msra.mxu0 0.0
  %1273 = vmatprep.subr.mxu0 0.0
  %1274 = vmatpush2.msra.mxu0 0.0
  %1275 = vmatprep.subr.mxu0 0.0
  %1276 = vmatpush2.msra.mxu0 0.0
  %1277 = vmatprep.subr.mxu0 0.0
  %1278 = vmatpush2.msra.mxu0 0.0
  %1279 = vmatprep.subr.mxu0 0.0
  %1280 = vmatpush2.msra.mxu0 0.0
  %1281 = vmatprep.subr.mxu0 0.0
  %1282 = vmatpush2.msra.mxu0 0.0
  %1283 = vmatprep.subr.mxu0 0.0
  %1284 = vmatpush2.msra.mxu0 0.0
  %1285 = vmatprep.subr.mxu0 0.0
  %1286 = vmatpush2.msra.mxu0 0.0
  %1287 = vmatprep.subr.mxu0 0.0
  %1288 = vmatpush2.msra.mxu0 0.0
  %1289 = vmatprep.subr.mxu0 0.0
  %1290 = vmatpush2.msra.mxu0 0.0
  %1291 = vmatprep.subr.mxu0 0.0
  %1292 = vmatpush2.msra.mxu0 0.0
  %1293 = vmatprep.subr.mxu0 0.0
  %1294 = vmatpush2.msra.mxu0 0.0
  %1295 = vmatprep.subr.mxu0 0.0
  %1296 = vmatpush2.msra.mxu0 0.0
  %1297 = vmatprep.subr.mxu0 0.0
  %1298 = vmatpush2.msra.mxu0 0.0
  %1299 = vmatprep.subr.mxu0 0.0
  %1300 = vmatpush2.msra.mxu0 0.0
  %1301 = vmatprep.subr.mxu0 0.0
  %1302 = vmatpush2.msra.mxu0 0.0
  %1303 = vmatprep.mubr.f32.mxu0 0.0
  %1304 = vmatmul.mubr.f32.gmra.mxu0 %v934
  %v1305 = vpop.f32.mrf.mxu0
  %v1306 = vadd.f32 0.0, %v1305
  %v1307 = vpop.f32.mrf.mxu0
  %1308 = vdwg.mxu0
  %v1309 = vmul.f32 %v1003, %v687
  %v1310 = vmul.f32 %v1005, %v691
  %v1311 = vmul.f32 %v1074, %v695
  %v1312 = vmul.f32 %v1235, %v687
  %v1313 = vmul.f32 %v1237, %v691
  %v1314 = vmul.f32 %v1306, %v695
  %v1315 = vadd.f32 %v1309, %v1310
  %v1316 = vsel %vm706, %v1311, 0.0
  %v1317 = vadd.f32 %v1315, %v1316
  %1318 = vadd.xlane.f32.xlu0 %v1317
  %v1319 = vpop.xlane.xlu0 %1318
  %v1320 = vadd.f32 %v1312, %v1313
  %v1321 = vsel %vm706, %v1314, 0.0
  %v1322 = vadd.f32 %v1320, %v1321
  %1323 = vadd.xlane.f32.xlu0 %v1322
  %v1324 = vpop.xlane.xlu0 %1323
  %v1325 = vmul.f32 %v1309, %v1309
  %v1326 = vmul.f32 %v1310, %v1310
  %v1327 = vmul.f32 %v1311, %v1311
  %v1328 = vmul.f32 %v1312, %v1312
  %v1329 = vmul.f32 %v1313, %v1313
  %v1330 = vmul.f32 %v1314, %v1314
  %v1331 = vadd.f32 %v1325, %v1326
  %v1332 = vsel %vm706, %v1327, 0.0
  %v1333 = vadd.f32 %v1331, %v1332
  %1334 = vadd.xlane.f32.xlu0 %v1333
  %v1335 = vpop.xlane.xlu0 %1334
  %v1336 = vadd.f32 %v1328, %v1329
  %v1337 = vsel %vm706, %v1330, 0.0
  %v1338 = vadd.f32 %v1336, %v1337
  %1339 = vadd.xlane.f32.xlu0 %v1338
  %v1340 = vpop.xlane.xlu0 %1339
  %v1341 = vadd.f32 %v1319, %v1324
  %v1342 = vadd.f32 %v1335, %v1340
  %v1343 = vmul.f32 %v1341, 0.001953125
  %v1344 = vmul.f32 %v1342, 0.001953125
  %v1345 = vmul.f32 %v1343, %v1343
  %v1346 = vsub.f32 %v1344, %v1345
  %v1347 = vld [vmem:[%s5] sm:$0xff]
  %v1348 = vadd.f32 %v1346, 1e-05
  %v1349 = vrsqrt.pop %v1348
  %v1350 = vmul.f32 %v1347, %v1349
  %v1351 = vld [vmem:[%s6] sm:$0xff]
  %v1352 = vmul.f32 %v1343, %v1350
  %v1353 = vsub.f32 %v1351, %v1352
  %1355 = vset.pattern.permute.xlu0 0
  %1356 = vperm.xlu0 %1355, %v1350
  %v1357 = vpop.permute.xlu0 %1356
  %v1359 = vmul.f32 %v1003, %v1357
  %v1360 = vmul.f32 %v1005, %v1357
  %v1361 = vmul.f32 %v1074, %v1357
  %v1362 = vmul.f32 %v1235, %v1357
  %v1363 = vmul.f32 %v1237, %v1357
  %v1364 = vmul.f32 %v1306, %v1357
  %1366 = vset.pattern.permute.xlu0 0
  %1367 = vperm.xlu0 %1366, %v1353
  %v1368 = vpop.permute.xlu0 %1367
  %v1370 = vadd.f32 %v1359, %v1368
  %v1371 = vadd.f32 %v1360, %v1368
  %v1372 = vadd.f32 %v1361, %v1368
  %v1373 = vadd.f32 %v1362, %v1368
  %v1374 = vadd.f32 %v1363, %v1368
  %v1375 = vadd.f32 %v1364, %v1368
  %v1376 = vadd.f32 %v1370, %v33
  %v1377 = vadd.f32 %v1373, %v35
  %vm1378 = vcmask 130048
  %1379 = vst.msk [vmem:[%s9] sm:$0xff] %vm1378, %v1376
  %1380 = vst.msk [vmem:[%s9 + $0x10] sm:$0xff] %vm1378, %v1377
  %1381 = vrot.lane.b32.xlu0 %v33, 2
  %v1382 = vpop.permute.xlu0 %1381
  %1383 = vrot.lane.b32.xlu0 %v35, 2
  %v1384 = vpop.permute.xlu0 %1383
  %v1387 = vadd.f32 %v1370, %v1382
  %v1388 = vadd.f32 %v1373, %v1384
  %1391 = vrot.lane.b32.xlu0 %v1387, 126
  %v1392 = vpop.permute.xlu0 %1391
  %1393 = vrot.lane.b32.xlu0 %v1388, 126
  %v1394 = vpop.permute.xlu0 %1393
  %vm1397 = vcmask 261248
  %1398 = vst.msk [vmem:[%s9] sm:$0xff] %vm1397, %v1392
  %1399 = vst.msk [vmem:[%s9 + $0x10] sm:$0xff] %vm1397, %v1394
  %1400 = vrot.lane.b32.xlu0 %v33, 4
  %v1401 = vpop.permute.xlu0 %1400
  %1402 = vrot.lane.b32.xlu0 %v35, 4
  %v1403 = vpop.permute.xlu0 %1402
  %v1406 = vadd.f32 %v1370, %v1401
  %v1407 = vadd.f32 %v1373, %v1403
  %1410 = vrot.lane.b32.xlu0 %v1406, 124
  %v1411 = vpop.permute.xlu0 %1410
  %1412 = vrot.lane.b32.xlu0 %v1407, 124
  %v1413 = vpop.permute.xlu0 %1412
  %vm1416 = vcmask 392448
  %1417 = vst.msk [vmem:[%s9] sm:$0xff] %vm1416, %v1411
  %1418 = vst.msk [vmem:[%s9 + $0x10] sm:$0xff] %vm1416, %v1413
  %1419 = vrot.lane.b32.xlu0 %v33, 6
  %v1420 = vpop.permute.xlu0 %1419
  %1421 = vrot.lane.b32.xlu0 %v35, 6
  %v1422 = vpop.permute.xlu0 %1421
  %v1425 = vadd.f32 %v1370, %v1420
  %v1426 = vadd.f32 %v1373, %v1422
  %1429 = vrot.lane.b32.xlu0 %v1425, 122
  %v1430 = vpop.permute.xlu0 %1429
  %1431 = vrot.lane.b32.xlu0 %v1426, 122
  %v1432 = vpop.permute.xlu0 %1431
  %vm1435 = vcmask 523648
  %1436 = vst.msk [vmem:[%s9] sm:$0xff] %vm1435, %v1430
  %1437 = vst.msk [vmem:[%s9 + $0x10] sm:$0xff] %vm1435, %v1432
  %1438 = vrot.lane.b32.xlu0 %v33, 8
  %v1439 = vpop.permute.xlu0 %1438
  %1440 = vrot.lane.b32.xlu0 %v35, 8
  %v1441 = vpop.permute.xlu0 %1440
  %v1444 = vadd.f32 %v1370, %v1439
  %v1445 = vadd.f32 %v1373, %v1441
  %1448 = vrot.lane.b32.xlu0 %v1444, 120
  %v1449 = vpop.permute.xlu0 %1448
  %1450 = vrot.lane.b32.xlu0 %v1445, 120
  %v1451 = vpop.permute.xlu0 %1450
  %vm1454 = vcmask 654848
  %1455 = vst.msk [vmem:[%s9] sm:$0xff] %vm1454, %v1449
  %1456 = vst.msk [vmem:[%s9 + $0x10] sm:$0xff] %vm1454, %v1451
  %1457 = vrot.lane.b32.xlu0 %v33, 10
  %v1458 = vpop.permute.xlu0 %1457
  %1459 = vrot.lane.b32.xlu0 %v35, 10
  %v1460 = vpop.permute.xlu0 %1459
  %v1463 = vadd.f32 %v1370, %v1458
  %v1464 = vadd.f32 %v1373, %v1460
  %1467 = vrot.lane.b32.xlu0 %v1463, 118
  %v1468 = vpop.permute.xlu0 %1467
  %1469 = vrot.lane.b32.xlu0 %v1464, 118
  %v1470 = vpop.permute.xlu0 %1469
  %vm1473 = vcmask 786048
  %1474 = vst.msk [vmem:[%s9] sm:$0xff] %vm1473, %v1468
  %1475 = vst.msk [vmem:[%s9 + $0x10] sm:$0xff] %vm1473, %v1470
  %1476 = vrot.lane.b32.xlu0 %v33, 12
  %v1477 = vpop.permute.xlu0 %1476
  %1478 = vrot.lane.b32.xlu0 %v35, 12
  %v1479 = vpop.permute.xlu0 %1478
  %v1482 = vadd.f32 %v1370, %v1477
  %v1483 = vadd.f32 %v1373, %v1479
  %1486 = vrot.lane.b32.xlu0 %v1482, 116
  %v1487 = vpop.permute.xlu0 %1486
  %1488 = vrot.lane.b32.xlu0 %v1483, 116
  %v1489 = vpop.permute.xlu0 %1488
  %vm1492 = vcmask 917248
  %1493 = vst.msk [vmem:[%s9] sm:$0xff] %vm1492, %v1487
  %1494 = vst.msk [vmem:[%s9 + $0x10] sm:$0xff] %vm1492, %v1489
  %1495 = vrot.lane.b32.xlu0 %v33, 14
  %v1496 = vpop.permute.xlu0 %1495
  %1497 = vrot.lane.b32.xlu0 %v35, 14
  %v1498 = vpop.permute.xlu0 %1497
  %v1501 = vadd.f32 %v1370, %v1496
  %v1502 = vadd.f32 %v1371, %v1496
  %v1503 = vadd.f32 %v1373, %v1498
  %v1504 = vadd.f32 %v1374, %v1498
  %1509 = vrot.lane.b32.xlu0 %v1501, 114
  %v1510 = vpop.permute.xlu0 %1509
  %1511 = vrot.lane.b32.xlu0 %v1502, 114
  %v1512 = vpop.permute.xlu0 %1511
  %1513 = vrot.lane.b32.xlu0 %v1503, 114
  %v1514 = vpop.permute.xlu0 %1513
  %1515 = vrot.lane.b32.xlu0 %v1504, 114
  %v1516 = vpop.permute.xlu0 %1515
  %vm1517 = vcmask 932864
  %v1518 = vsel %vm1517, %v1510, %v1512
  %v1519 = vsel %vm1517, %v1514, %v1516
  %vm1522 = vcmask 1048448
  %1523 = vst.msk [vmem:[%s9] sm:$0xff] %vm1522, %v1518
  %1524 = vst.msk [vmem:[%s9 + $0x10] sm:$0xff] %vm1522, %v1519
  %1525 = vrot.lane.b32.xlu0 %v34, 16
  %v1526 = vpop.permute.xlu0 %1525
  %1527 = vrot.lane.b32.xlu0 %v36, 16
  %v1528 = vpop.permute.xlu0 %1527
  %v1531 = vadd.f32 %v1371, %v1526
  %v1532 = vadd.f32 %v1374, %v1528
  %1535 = vrot.lane.b32.xlu0 %v1531, 112
  %v1536 = vpop.permute.xlu0 %1535
  %1537 = vrot.lane.b32.xlu0 %v1532, 112
  %v1538 = vpop.permute.xlu0 %1537
  %1541 = vst.msk [vmem:[%s9 + $0x8] sm:$0xff] %vm1378, %v1536
  %1542 = vst.msk [vmem:[%s9 + $0x18] sm:$0xff] %vm1378, %v1538
  %1543 = vrot.lane.b32.xlu0 %v34, 18
  %v1544 = vpop.permute.xlu0 %1543
  %1545 = vrot.lane.b32.xlu0 %v36, 18
  %v1546 = vpop.permute.xlu0 %1545
  %v1549 = vadd.f32 %v1371, %v1544
  %v1550 = vadd.f32 %v1374, %v1546
  %1553 = vrot.lane.b32.xlu0 %v1549, 110
  %v1554 = vpop.permute.xlu0 %1553
  %1555 = vrot.lane.b32.xlu0 %v1550, 110
  %v1556 = vpop.permute.xlu0 %1555
  %1559 = vst.msk [vmem:[%s9 + $0x8] sm:$0xff] %vm1397, %v1554
  %1560 = vst.msk [vmem:[%s9 + $0x18] sm:$0xff] %vm1397, %v1556
  %1561 = vrot.lane.b32.xlu0 %v34, 20
  %v1562 = vpop.permute.xlu0 %1561
  %1563 = vrot.lane.b32.xlu0 %v36, 20
  %v1564 = vpop.permute.xlu0 %1563
  %v1567 = vadd.f32 %v1371, %v1562
  %v1568 = vadd.f32 %v1374, %v1564
  %1571 = vrot.lane.b32.xlu0 %v1567, 108
  %v1572 = vpop.permute.xlu0 %1571
  %1573 = vrot.lane.b32.xlu0 %v1568, 108
  %v1574 = vpop.permute.xlu0 %1573
  %1577 = vst.msk [vmem:[%s9 + $0x8] sm:$0xff] %vm1416, %v1572
  %1578 = vst.msk [vmem:[%s9 + $0x18] sm:$0xff] %vm1416, %v1574
  %1579 = vrot.lane.b32.xlu0 %v34, 22
  %v1580 = vpop.permute.xlu0 %1579
  %1581 = vrot.lane.b32.xlu0 %v36, 22
  %v1582 = vpop.permute.xlu0 %1581
  %v1585 = vadd.f32 %v1371, %v1580
  %v1586 = vadd.f32 %v1374, %v1582
  %1589 = vrot.lane.b32.xlu0 %v1585, 106
  %v1590 = vpop.permute.xlu0 %1589
  %1591 = vrot.lane.b32.xlu0 %v1586, 106
  %v1592 = vpop.permute.xlu0 %1591
  %1595 = vst.msk [vmem:[%s9 + $0x8] sm:$0xff] %vm1435, %v1590
  %1596 = vst.msk [vmem:[%s9 + $0x18] sm:$0xff] %vm1435, %v1592
  %1597 = vrot.lane.b32.xlu0 %v34, 24
  %v1598 = vpop.permute.xlu0 %1597
  %1599 = vrot.lane.b32.xlu0 %v36, 24
  %v1600 = vpop.permute.xlu0 %1599
  %v1603 = vadd.f32 %v1371, %v1598
  %v1604 = vadd.f32 %v1374, %v1600
  %1607 = vrot.lane.b32.xlu0 %v1603, 104
  %v1608 = vpop.permute.xlu0 %1607
  %1609 = vrot.lane.b32.xlu0 %v1604, 104
  %v1610 = vpop.permute.xlu0 %1609
  %1613 = vst.msk [vmem:[%s9 + $0x8] sm:$0xff] %vm1454, %v1608
  %1614 = vst.msk [vmem:[%s9 + $0x18] sm:$0xff] %vm1454, %v1610
  %1615 = vrot.lane.b32.xlu0 %v34, 26
  %v1616 = vpop.permute.xlu0 %1615
  %1617 = vrot.lane.b32.xlu0 %v36, 26
  %v1618 = vpop.permute.xlu0 %1617
  %v1621 = vadd.f32 %v1371, %v1616
  %v1622 = vadd.f32 %v1374, %v1618
  %1625 = vrot.lane.b32.xlu0 %v1621, 102
  %v1626 = vpop.permute.xlu0 %1625
  %1627 = vrot.lane.b32.xlu0 %v1622, 102
  %v1628 = vpop.permute.xlu0 %1627
  %1631 = vst.msk [vmem:[%s9 + $0x8] sm:$0xff] %vm1473, %v1626
  %1632 = vst.msk [vmem:[%s9 + $0x18] sm:$0xff] %vm1473, %v1628
  %1633 = vrot.lane.b32.xlu0 %v34, 28
  %v1634 = vpop.permute.xlu0 %1633
  %1635 = vrot.lane.b32.xlu0 %v36, 28
  %v1636 = vpop.permute.xlu0 %1635
  %v1639 = vadd.f32 %v1371, %v1634
  %v1640 = vadd.f32 %v1372, %v1634
  %v1641 = vadd.f32 %v1374, %v1636
  %v1642 = vadd.f32 %v1375, %v1636
  %1647 = vrot.lane.b32.xlu0 %v1639, 100
  %v1648 = vpop.permute.xlu0 %1647
  %1649 = vrot.lane.b32.xlu0 %v1640, 100
  %v1650 = vpop.permute.xlu0 %1649
  %1651 = vrot.lane.b32.xlu0 %v1641, 100
  %v1652 = vpop.permute.xlu0 %1651
  %1653 = vrot.lane.b32.xlu0 %v1642, 100
  %v1654 = vpop.permute.xlu0 %1653
  %vm1655 = vcmask 818176
  %v1656 = vsel %vm1655, %v1648, %v1650
  %v1657 = vsel %vm1655, %v1652, %v1654
  %1660 = vst.msk [vmem:[%s9 + $0x8] sm:$0xff] %vm1492, %v1656
  %1661 = vst.msk [vmem:[%s9 + $0x18] sm:$0xff] %vm1492, %v1657
  %1662 = vrot.lane.b32.xlu0 %v34, 30
  %v1663 = vpop.permute.xlu0 %1662
  %1664 = vrot.lane.b32.xlu0 %v36, 30
  %v1665 = vpop.permute.xlu0 %1664
  %v1668 = vadd.f32 %v1372, %v1663
  %v1669 = vadd.f32 %v1375, %v1665
  %1672 = vrot.lane.b32.xlu0 %v1668, 98
  %v1673 = vpop.permute.xlu0 %1672
  %1674 = vrot.lane.b32.xlu0 %v1669, 98
  %v1675 = vpop.permute.xlu0 %1674
  %1678 = vst.msk [vmem:[%s9 + $0x8] sm:$0xff] %vm1522, %v1673
  %1679 = vst.msk [vmem:[%s9 + $0x18] sm:$0xff] %vm1522, %v1675
  // Predicated region
  $region38: #{residual_block.1} parent=0 // pred_check
    _
  $region39: #{residual_block.1} parent=0 // pred_check_branch
    %1681 = sbr.rel (0) target = $region41
  $region40: #{residual_block.1} parent=0 // pred_region
    _
  $region41: #{residual_block.1} parent=0 // pred_fallthru
    _
  // Predicated region
  $region42: #{residual_block.1} parent=0 // pred_check
    _
  $region43: #{residual_block.1} parent=0 // pred_check_branch
    %1683 = sbr.rel (0) target = $region45
  $region44: #{residual_block.1} parent=0 // pred_region
    _
  $region45: #{residual_block.1} parent=0 // pred_fallthru
    _

</llo_original>
